<compile_context>
chip_gen: v7x
topology: tpu7x:2x2x1
jax: 0.10.0
libtpu: 0.0.40
codegen_flags: <defaults>
</compile_context>

<pallas_src>
import math
import functools

import jax
import jax.numpy as jnp
from jax import lax
from jax.experimental import pallas as pl
from jax.experimental.pallas import tpu as pltpu

LN_EPS = 1e-5
NEG_BIG = -1e30  # finite causal-mask bias (safer than -inf with bf16 in the mix)


def _layernorm(x, w, b):
    # x: (S, D) f32, w/b: (1, D) f32.  Two-pass variance (cancellation-safe).
    mean = jnp.mean(x, axis=-1, keepdims=True)
    xc = x - mean
    var = jnp.mean(xc * xc, axis=-1, keepdims=True)
    return xc * lax.rsqrt(var + LN_EPS) * w + b


def clip_layer_kernel(n_head,
                      x_ref, mask_ref,
                      ln1w_ref, ln1b_ref,
                      win_ref, bin_ref,
                      wout_ref, bout_ref,
                      ln2w_ref, ln2b_ref,
                      w1_ref, b1_ref,
                      w2_ref, b2_ref,
                      o_ref):
    bf16 = jnp.bfloat16
    f32 = jnp.float32

    x = x_ref[0].astype(f32)                     # (S, D)
    S, D = x.shape
    H = n_head
    dh = D // H

    # ---------------- residual 1: causal multi-head self-attention ----------------
    residue = x
    h = _layernorm(x, ln1w_ref[...], ln1b_ref[...])                       # (S, D) f32

    # Single QKV projection.  1/sqrt(d_head) is pre-folded into the q columns
    # of w_in / b_in by the wrapper.
    qkv = jnp.dot(h.astype(bf16), win_ref[...],
                  preferred_element_type=f32) + bin_ref[...]              # (S, 3D) f32

    # One bf16 cast + one relayout to head-major (3H, S, dh): per-head slices
    # become leading-axis (lane-aligned) instead of dh-offset lane slices.
    qkv_h = jnp.transpose(qkv.astype(bf16).reshape(S, 3 * H, dh), (1, 0, 2))
    q = qkv_h[0 * H:1 * H]                                                # (H, S, dh) bf16
    k = qkv_h[1 * H:2 * H]
    v = qkv_h[2 * H:3 * H]

    # Batched over heads: no per-head unroll, no explicit k.T transpose
    # (einsum contracts the last axes of both operands directly on the MXU).
    scores = jnp.einsum('hqd,hkd->hqk', q, k,
                        preferred_element_type=f32)                       # (H, S, S) f32
    scores = scores + mask_ref[...]                                       # (S, S) causal bias
    scores = scores - jnp.max(scores, axis=-1, keepdims=True)
    p = jnp.exp(scores)
    p = p * pl.reciprocal(jnp.sum(p, axis=-1, keepdims=True), approx=True)
    o = jnp.einsum('hqk,hkd->hqd', p.astype(bf16), v,
                   preferred_element_type=f32)                            # (H, S, dh) f32

    # Single full-width out-projection (contraction depth K = D).
    o_flat = jnp.transpose(o, (1, 0, 2)).reshape(S, D).astype(bf16)       # (S, D) bf16
    attn = jnp.dot(o_flat, wout_ref[...],
                   preferred_element_type=f32) + bout_ref[...]            # (S, D) f32
    x1 = attn + residue

    # ---------------- residual 2: quick-GELU MLP ----------------
    residue = x1
    h2 = _layernorm(x1, ln2w_ref[...], ln2b_ref[...])                     # (S, D) f32
    t = jnp.dot(h2.astype(bf16), w1_ref[...],
                preferred_element_type=f32) + b1_ref[...]                 # (S, 4D) f32
    # quick-GELU: t * sigmoid(1.702 t); the reciprocal rides the EUP slot.
    t = t * pl.reciprocal(1.0 + jnp.exp(-1.702 * t), approx=True)
    out = jnp.dot(t.astype(bf16), w2_ref[...],
                  preferred_element_type=f32) + b2_ref[...]               # (S, D) f32
    o_ref[0] = (out + residue).astype(o_ref.dtype)


def _vmem_limit_bytes(S, D, n_head, kparams, x_itemsize):
    # Weights (default double-buffered, but DMA'd once since index_map is
    # grid-invariant) + double-buffered x/out blocks + in-kernel temporaries
    # (qkv, head-major copies, scores, p, t, residues).
    w_bytes = sum(int(p.size) * p.dtype.itemsize for p in kparams)
    io_bytes = 2 * 2 * S * D * x_itemsize
    tmp_bytes = (14 * S * D + (2 * n_head + 1) * S * S) * 4
    need = 2 * w_bytes + io_bytes + tmp_bytes
    limit = int(1.4 * need) + (8 << 20)
    try:
        cap = pltpu.get_tpu_info().vmem_capacity_bytes
    except Exception:
        cap = 64 << 20  # conservative (v7x-sized) fallback
    return min(max(limit, 32 << 20), int(0.85 * cap))


def clip_layer(x, params, n_head):
    (ln1_w, ln1_b, w_in, b_in, w_out, b_out,
     ln2_w, ln2_b, w1, b1, w2, b2) = params
    B, S, D = x.shape
    bf16 = jnp.bfloat16

    # Fold 1/sqrt(d_head) into the q columns of the QKV projection (wrapper-side).
    scale = 1.0 / math.sqrt(D // n_head)
    w_in = jnp.asarray(w_in).at[:, :D].multiply(scale)
    b_in = jnp.asarray(b_in).at[:, :D].multiply(scale)

    # Matmul weights fed as bf16 (halves weight HBM traffic / VMEM residency);
    # accumulation is f32 inside the kernel.  LN params / biases stay f32.
    kparams = (ln1_w, ln1_b,
               w_in.astype(bf16), b_in,
               w_out.astype(bf16), b_out,
               ln2_w, ln2_b,
               w1.astype(bf16), b1,
               w2.astype(bf16), b2)

    # Causal mask as a finite additive bias, built once and fed as a
    # grid-invariant input.
    row = lax.broadcasted_iota(jnp.int32, (S, S), 0)
    col = lax.broadcasted_iota(jnp.int32, (S, S), 1)
    mask = jnp.where(col > row, jnp.float32(NEG_BIG), jnp.float32(0.0))

    kernel = functools.partial(clip_layer_kernel, n_head)

    def inv_spec(p):
        r = p.ndim
        return pl.BlockSpec(p.shape, lambda b, r=r: (0,) * r)

    in_specs = [pl.BlockSpec((1, S, D), lambda b: (b, 0, 0)),  # x (double-buffered)
                inv_spec(mask)]
    in_specs += [inv_spec(p) for p in kparams]                 # grid-invariant

    return pl.pallas_call(
        kernel,
        out_shape=jax.ShapeDtypeStruct((B, S, D), x.dtype),
        grid_spec=pltpu.PrefetchScalarGridSpec(
            num_scalar_prefetch=0,
            grid=(B,),
            in_specs=in_specs,
            out_specs=pl.BlockSpec((1, S, D), lambda b: (b, 0, 0)),
        ),
        compiler_params=pltpu.CompilerParams(
            dimension_semantics=("parallel",),
            vmem_limit_bytes=_vmem_limit_bytes(S, D, n_head, kparams,
                                               x.dtype.itemsize)),
    )(x, mask, *kparams)


def init_params(key, n_embed):
    D = n_embed
    ks = jax.random.split(key, 4)
    scale = 0.02
    ln1_w = jnp.ones((1, D), jnp.float32)
    ln1_b = jnp.zeros((1, D), jnp.float32)
    w_in = scale * jax.random.normal(ks[0], (D, 3 * D), jnp.float32)
    b_in = jnp.zeros((1, 3 * D), jnp.float32)
    w_out = scale * jax.random.normal(ks[1], (D, D), jnp.float32)
    b_out = jnp.zeros((1, D), jnp.float32)
    ln2_w = jnp.ones((1, D), jnp.float32)
    ln2_b = jnp.zeros((1, D), jnp.float32)
    w1 = scale * jax.random.normal(ks[2], (D, 4 * D), jnp.float32)
    b1 = jnp.zeros((1, 4 * D), jnp.float32)
    w2 = scale * jax.random.normal(ks[3], (4 * D, D), jnp.float32)
    b2 = jnp.zeros((1, D), jnp.float32)
    return (ln1_w, ln1_b, w_in, b_in, w_out, b_out,
            ln2_w, ln2_b, w1, b1, w2, b2)


def clip_layer_ref(x, params, n_head):
    """Pure-JAX f32 reference matching the PyTorch forward."""
    (ln1_w, ln1_b, w_in, b_in, w_out, b_out,
     ln2_w, ln2_b, w1, b1, w2, b2) = params
    B, S, D = x.shape
    dh = D // n_head

    def ln(v, w, b):
        m = v.mean(-1, keepdims=True)
        va = ((v - m) ** 2).mean(-1, keepdims=True)
        return (v - m) / jnp.sqrt(va + LN_EPS) * w + b

    res = x
    h = ln(x, ln1_w, ln1_b)
    qkv = h @ w_in + b_in
    q, k, v = jnp.split(qkv, 3, axis=-1)
    q = q.reshape(B, S, n_head, dh).transpose(0, 2, 1, 3)
    k = k.reshape(B, S, n_head, dh).transpose(0, 2, 1, 3)
    v = v.reshape(B, S, n_head, dh).transpose(0, 2, 1, 3)
    w = jnp.einsum('bhqd,bhkd->bhqk', q, k)
    mask = jnp.triu(jnp.ones((S, S), bool), 1)
    w = jnp.where(mask, -jnp.inf, w) / math.sqrt(dh)
    w = jax.nn.softmax(w, axis=-1)
    o = jnp.einsum('bhqk,bhkd->bhqd', w, v).transpose(0, 2, 1, 3).reshape(B, S, D)
    x1 = o @ w_out + b_out + res
    res = x1
    h2 = ln(x1, ln2_w, ln2_b)
    h2 = h2 @ w1 + b1
    h2 = h2 * jax.nn.sigmoid(1.702 * h2)
    h2 = h2 @ w2 + b2
    return h2 + res


if __name__ == "__main__":
    B, S, D, H = 2, 8, 32, 4
    key = jax.random.PRNGKey(0)
    kx, kp = jax.random.split(key)
    x = jax.random.normal(kx, (B, S, D), jnp.float32)
    params = init_params(kp, D)

    out = jax.block_until_ready(clip_layer(x, params, H))
    ref = clip_layer_ref(x, params, H)

    assert out.shape == (B, S, D)
    # bf16 matmul inputs (f32 accumulation) -> loosened tolerance vs f32 ref.
    assert jnp.allclose(out, ref, atol=2e-2, rtol=2e-2), (
        float(jnp.max(jnp.abs(out - ref))))
    print("KERNEL_OK")
</pallas_src>

<mosaic_0001>
module attributes {stable_mosaic.version = 11 : i64} {
  func.func @clip_layer_kernel(%arg0: i32, %arg1: memref<1x8x32xf32, #tpu.memory_space<vmem>>, %arg2: memref<8x8xf32, #tpu.memory_space<vmem>>, %arg3: memref<1x32xf32, #tpu.memory_space<vmem>>, %arg4: memref<1x32xf32, #tpu.memory_space<vmem>>, %arg5: memref<32x96xbf16, #tpu.memory_space<vmem>>, %arg6: memref<1x96xf32, #tpu.memory_space<vmem>>, %arg7: memref<32x32xbf16, #tpu.memory_space<vmem>>, %arg8: memref<1x32xf32, #tpu.memory_space<vmem>>, %arg9: memref<1x32xf32, #tpu.memory_space<vmem>>, %arg10: memref<1x32xf32, #tpu.memory_space<vmem>>, %arg11: memref<32x128xbf16, #tpu.memory_space<vmem>>, %arg12: memref<1x128xf32, #tpu.memory_space<vmem>>, %arg13: memref<128x32xbf16, #tpu.memory_space<vmem>>, %arg14: memref<1x32xf32, #tpu.memory_space<vmem>>, %arg15: memref<1x8x32xf32, #tpu.memory_space<vmem>>) attributes {dimension_semantics = [#tpu.dimension_semantics<parallel>], iteration_bounds = array<i64: 2>, scalar_prefetch = 0 : i64, scratch_operands = 0 : i64, tpu.core_type = #tpu.core_type<tc>, window_params = [{transform_indices = @transform_0, window_bounds = array<i64: 1, 8, 32>}, {pipeline_mode = #tpu.pipeline_mode<synchronous>, transform_indices = @transform_1, window_bounds = array<i64: 8, 8>}, {pipeline_mode = #tpu.pipeline_mode<synchronous>, transform_indices = @transform_2, window_bounds = array<i64: 1, 32>}, {pipeline_mode = #tpu.pipeline_mode<synchronous>, transform_indices = @transform_3, window_bounds = array<i64: 1, 32>}, {pipeline_mode = #tpu.pipeline_mode<synchronous>, transform_indices = @transform_4, window_bounds = array<i64: 32, 96>}, {pipeline_mode = #tpu.pipeline_mode<synchronous>, transform_indices = @transform_5, window_bounds = array<i64: 1, 96>}, {pipeline_mode = #tpu.pipeline_mode<synchronous>, transform_indices = @transform_6, window_bounds = array<i64: 32, 32>}, {pipeline_mode = #tpu.pipeline_mode<synchronous>, transform_indices = @transform_7, window_bounds = array<i64: 1, 32>}, {pipeline_mode = #tpu.pipeline_mode<synchronous>, transform_indices = @transform_8, window_bounds = array<i64: 1, 32>}, {pipeline_mode = #tpu.pipeline_mode<synchronous>, transform_indices = @transform_9, window_bounds = array<i64: 1, 32>}, {pipeline_mode = #tpu.pipeline_mode<synchronous>, transform_indices = @transform_10, window_bounds = array<i64: 32, 128>}, {pipeline_mode = #tpu.pipeline_mode<synchronous>, transform_indices = @transform_11, window_bounds = array<i64: 1, 128>}, {pipeline_mode = #tpu.pipeline_mode<synchronous>, transform_indices = @transform_12, window_bounds = array<i64: 128, 32>}, {pipeline_mode = #tpu.pipeline_mode<synchronous>, transform_indices = @transform_13, window_bounds = array<i64: 1, 32>}, {transform_indices = @transform_14, window_bounds = array<i64: 1, 8, 32>}]} {
    %c0 = arith.constant 0 : index
    %c0_0 = arith.constant 0 : index
    %c0_1 = arith.constant 0 : index
    %0 = vector.load %arg1[%c0, %c0_0, %c0_1] : memref<1x8x32xf32, #tpu.memory_space<vmem>>, vector<1x8x32xf32>
    %1 = vector.shape_cast %0 : vector<1x8x32xf32> to vector<8x32xf32>
    %c0_2 = arith.constant 0 : index
    %c0_3 = arith.constant 0 : index
    %2 = vector.load %arg3[%c0_2, %c0_3] : memref<1x32xf32, #tpu.memory_space<vmem>>, vector<1x32xf32>
    %c0_4 = arith.constant 0 : index
    %c0_5 = arith.constant 0 : index
    %3 = vector.load %arg4[%c0_4, %c0_5] : memref<1x32xf32, #tpu.memory_space<vmem>>, vector<1x32xf32>
    %cst = arith.constant dense<0.000000e+00> : vector<8xf32>
    %4 = vector.multi_reduction <add>, %1, %cst [1] : vector<8x32xf32> to vector<8xf32>
    %5 = vector.shape_cast %4 : vector<8xf32> to vector<8x1xf32>
    %cst_6 = arith.constant 3.200000e+01 : f32
    %6 = vector.broadcast %cst_6 : f32 to vector<8x1xf32>
    %7 = arith.divf %5, %6 : vector<8x1xf32>
    %8 = vector.broadcast %7 : vector<8x1xf32> to vector<8x32xf32>
    %9 = arith.subf %1, %8 : vector<8x32xf32>
    %10 = arith.mulf %9, %9 : vector<8x32xf32>
    %cst_7 = arith.constant dense<0.000000e+00> : vector<8xf32>
    %11 = vector.multi_reduction <add>, %10, %cst_7 [1] : vector<8x32xf32> to vector<8xf32>
    %12 = vector.shape_cast %11 : vector<8xf32> to vector<8x1xf32>
    %cst_8 = arith.constant 3.200000e+01 : f32
    %13 = vector.broadcast %cst_8 : f32 to vector<8x1xf32>
    %14 = arith.divf %12, %13 : vector<8x1xf32>
    %cst_9 = arith.constant 9.99999974E-6 : f32
    %15 = vector.broadcast %cst_9 : f32 to vector<8x1xf32>
    %16 = arith.addf %14, %15 : vector<8x1xf32>
    %17 = math.rsqrt %16 : vector<8x1xf32>
    %18 = vector.broadcast %17 : vector<8x1xf32> to vector<8x32xf32>
    %19 = arith.mulf %9, %18 : vector<8x32xf32>
    %20 = vector.broadcast %2 : vector<1x32xf32> to vector<8x32xf32>
    %21 = arith.mulf %19, %20 : vector<8x32xf32>
    %22 = vector.broadcast %3 : vector<1x32xf32> to vector<8x32xf32>
    %23 = arith.addf %21, %22 : vector<8x32xf32>
    %24 = arith.truncf %23 : vector<8x32xf32> to vector<8x32xbf16>
    %c0_10 = arith.constant 0 : index
    %c0_11 = arith.constant 0 : index
    %25 = vector.load %arg5[%c0_10, %c0_11] : memref<32x96xbf16, #tpu.memory_space<vmem>>, vector<32x96xbf16>
    %cst_12 = arith.constant dense<0.000000e+00> : vector<8x96xf32>
    %26 = tpu.matmul %24, %25, %cst_12 {dimension_numbers = #tpu.dot_dimension_numbers<[1], [0], [0], [1], [0, 0, 1, 1], [], []>} : vector<8x32xbf16>, vector<32x96xbf16>, vector<8x96xf32> -> vector<8x96xf32>
    %c0_13 = arith.constant 0 : index
    %c0_14 = arith.constant 0 : index
    %27 = vector.load %arg6[%c0_13, %c0_14] : memref<1x96xf32, #tpu.memory_space<vmem>>, vector<1x96xf32>
    %28 = vector.broadcast %27 : vector<1x96xf32> to vector<8x96xf32>
    %29 = arith.addf %26, %28 : vector<8x96xf32>
    %30 = arith.truncf %29 : vector<8x96xf32> to vector<8x96xbf16>
    %31 = vector.shape_cast %30 : vector<8x96xbf16> to vector<8x12x8xbf16>
    %32 = tpu.transpose %31, [1, 0, 2] : vector<8x12x8xbf16> -> vector<12x8x8xbf16>
    %33 = vector.extract_strided_slice %32 {offsets = [0, 0, 0], sizes = [4, 8, 8], strides = [1, 1, 1]} : vector<12x8x8xbf16> to vector<4x8x8xbf16>
    %34 = vector.extract_strided_slice %32 {offsets = [4, 0, 0], sizes = [4, 8, 8], strides = [1, 1, 1]} : vector<12x8x8xbf16> to vector<4x8x8xbf16>
    %35 = vector.extract_strided_slice %32 {offsets = [8, 0, 0], sizes = [4, 8, 8], strides = [1, 1, 1]} : vector<12x8x8xbf16> to vector<4x8x8xbf16>
    "tpu.trace_start"() <{level = 10 : i32, message = "hqd,hkd->hqk"}> : () -> ()
    %cst_15 = arith.constant dense<0.000000e+00> : vector<4x8x8xf32>
    %36 = tpu.matmul %33, %34, %cst_15 {dimension_numbers = #tpu.dot_dimension_numbers<[2], [2], [1], [1], [0, 0, 0, 1, 1, 1], [0], [0]>} : vector<4x8x8xbf16>, vector<4x8x8xbf16>, vector<4x8x8xf32> -> vector<4x8x8xf32>
    "tpu.trace_stop"() : () -> ()
    %c0_16 = arith.constant 0 : index
    %c0_17 = arith.constant 0 : index
    %37 = vector.load %arg2[%c0_16, %c0_17] : memref<8x8xf32, #tpu.memory_space<vmem>>, vector<8x8xf32>
    %38 = vector.shape_cast %37 : vector<8x8xf32> to vector<1x8x8xf32>
    %39 = vector.broadcast %38 : vector<1x8x8xf32> to vector<4x8x8xf32>
    %40 = arith.addf %36, %39 : vector<4x8x8xf32>
    %cst_18 = arith.constant dense<0xFF800000> : vector<4x8xf32>
    %41 = vector.multi_reduction <maximumf>, %40, %cst_18 [2] : vector<4x8x8xf32> to vector<4x8xf32>
    %42 = vector.shape_cast %41 : vector<4x8xf32> to vector<4x8x1xf32>
    %43 = vector.broadcast %42 : vector<4x8x1xf32> to vector<4x8x8xf32>
    %44 = arith.subf %40, %43 : vector<4x8x8xf32>
    %45 = math.exp %44 : vector<4x8x8xf32>
    %cst_19 = arith.constant dense<0.000000e+00> : vector<4x8xf32>
    %46 = vector.multi_reduction <add>, %45, %cst_19 [2] : vector<4x8x8xf32> to vector<4x8xf32>
    %47 = vector.shape_cast %46 : vector<4x8xf32> to vector<4x8x1xf32>
    %48 = tpu.reciprocal %47 {approx = true} : vector<4x8x1xf32> -> vector<4x8x1xf32>
    %49 = vector.broadcast %48 : vector<4x8x1xf32> to vector<4x8x8xf32>
    %50 = arith.mulf %45, %49 : vector<4x8x8xf32>
    %51 = arith.truncf %50 : vector<4x8x8xf32> to vector<4x8x8xbf16>
    "tpu.trace_start"() <{level = 10 : i32, message = "hqk,hkd->hqd"}> : () -> ()
    %cst_20 = arith.constant dense<0.000000e+00> : vector<4x8x8xf32>
    %52 = tpu.matmul %51, %35, %cst_20 {dimension_numbers = #tpu.dot_dimension_numbers<[2], [1], [1], [2], [0, 0, 0, 1, 1, 2], [0], [0]>} : vector<4x8x8xbf16>, vector<4x8x8xbf16>, vector<4x8x8xf32> -> vector<4x8x8xf32>
    "tpu.trace_stop"() : () -> ()
    %53 = tpu.transpose %52, [1, 0, 2] : vector<4x8x8xf32> -> vector<8x4x8xf32>
    %54 = vector.shape_cast %53 : vector<8x4x8xf32> to vector<8x32xf32>
    %55 = arith.truncf %54 : vector<8x32xf32> to vector<8x32xbf16>
    %c0_21 = arith.constant 0 : index
    %c0_22 = arith.constant 0 : index
    %56 = vector.load %arg7[%c0_21, %c0_22] : memref<32x32xbf16, #tpu.memory_space<vmem>>, vector<32x32xbf16>
    %cst_23 = arith.constant dense<0.000000e+00> : vector<8x32xf32>
    %57 = tpu.matmul %55, %56, %cst_23 {dimension_numbers = #tpu.dot_dimension_numbers<[1], [0], [0], [1], [0, 0, 1, 1], [], []>} : vector<8x32xbf16>, vector<32x32xbf16>, vector<8x32xf32> -> vector<8x32xf32>
    %c0_24 = arith.constant 0 : index
    %c0_25 = arith.constant 0 : index
    %58 = vector.load %arg8[%c0_24, %c0_25] : memref<1x32xf32, #tpu.memory_space<vmem>>, vector<1x32xf32>
    %59 = vector.broadcast %58 : vector<1x32xf32> to vector<8x32xf32>
    %60 = arith.addf %57, %59 : vector<8x32xf32>
    %61 = arith.addf %60, %1 : vector<8x32xf32>
    %c0_26 = arith.constant 0 : index
    %c0_27 = arith.constant 0 : index
    %62 = vector.load %arg9[%c0_26, %c0_27] : memref<1x32xf32, #tpu.memory_space<vmem>>, vector<1x32xf32>
    %c0_28 = arith.constant 0 : index
    %c0_29 = arith.constant 0 : index
    %63 = vector.load %arg10[%c0_28, %c0_29] : memref<1x32xf32, #tpu.memory_space<vmem>>, vector<1x32xf32>
    %cst_30 = arith.constant dense<0.000000e+00> : vector<8xf32>
    %64 = vector.multi_reduction <add>, %61, %cst_30 [1] : vector<8x32xf32> to vector<8xf32>
    %65 = vector.shape_cast %64 : vector<8xf32> to vector<8x1xf32>
    %cst_31 = arith.constant 3.200000e+01 : f32
    %66 = vector.broadcast %cst_31 : f32 to vector<8x1xf32>
    %67 = arith.divf %65, %66 : vector<8x1xf32>
    %68 = vector.broadcast %67 : vector<8x1xf32> to vector<8x32xf32>
    %69 = arith.subf %61, %68 : vector<8x32xf32>
    %70 = arith.mulf %69, %69 : vector<8x32xf32>
    %cst_32 = arith.constant dense<0.000000e+00> : vector<8xf32>
    %71 = vector.multi_reduction <add>, %70, %cst_32 [1] : vector<8x32xf32> to vector<8xf32>
    %72 = vector.shape_cast %71 : vector<8xf32> to vector<8x1xf32>
    %cst_33 = arith.constant 3.200000e+01 : f32
    %73 = vector.broadcast %cst_33 : f32 to vector<8x1xf32>
    %74 = arith.divf %72, %73 : vector<8x1xf32>
    %cst_34 = arith.constant 9.99999974E-6 : f32
    %75 = vector.broadcast %cst_34 : f32 to vector<8x1xf32>
    %76 = arith.addf %74, %75 : vector<8x1xf32>
    %77 = math.rsqrt %76 : vector<8x1xf32>
    %78 = vector.broadcast %77 : vector<8x1xf32> to vector<8x32xf32>
    %79 = arith.mulf %69, %78 : vector<8x32xf32>
    %80 = vector.broadcast %62 : vector<1x32xf32> to vector<8x32xf32>
    %81 = arith.mulf %79, %80 : vector<8x32xf32>
    %82 = vector.broadcast %63 : vector<1x32xf32> to vector<8x32xf32>
    %83 = arith.addf %81, %82 : vector<8x32xf32>
    %84 = arith.truncf %83 : vector<8x32xf32> to vector<8x32xbf16>
    %c0_35 = arith.constant 0 : index
    %c0_36 = arith.constant 0 : index
    %85 = vector.load %arg11[%c0_35, %c0_36] : memref<32x128xbf16, #tpu.memory_space<vmem>>, vector<32x128xbf16>
    %cst_37 = arith.constant dense<0.000000e+00> : vector<8x128xf32>
    %86 = tpu.matmul %84, %85, %cst_37 {dimension_numbers = #tpu.dot_dimension_numbers<[1], [0], [0], [1], [0, 0, 1, 1], [], []>} : vector<8x32xbf16>, vector<32x128xbf16>, vector<8x128xf32> -> vector<8x128xf32>
    %c0_38 = arith.constant 0 : index
    %c0_39 = arith.constant 0 : index
    %87 = vector.load %arg12[%c0_38, %c0_39] : memref<1x128xf32, #tpu.memory_space<vmem>>, vector<1x128xf32>
    %88 = vector.broadcast %87 : vector<1x128xf32> to vector<8x128xf32>
    %89 = arith.addf %86, %88 : vector<8x128xf32>
    %cst_40 = arith.constant -1.702000e+00 : f32
    %90 = vector.broadcast %cst_40 : f32 to vector<8x128xf32>
    %91 = arith.mulf %90, %89 : vector<8x128xf32>
    %92 = math.exp %91 : vector<8x128xf32>
    %cst_41 = arith.constant 1.000000e+00 : f32
    %93 = vector.broadcast %cst_41 : f32 to vector<8x128xf32>
    %94 = arith.addf %93, %92 : vector<8x128xf32>
    %95 = tpu.reciprocal %94 {approx = true} : vector<8x128xf32> -> vector<8x128xf32>
    %96 = arith.mulf %89, %95 : vector<8x128xf32>
    %97 = arith.truncf %96 : vector<8x128xf32> to vector<8x128xbf16>
    %c0_42 = arith.constant 0 : index
    %c0_43 = arith.constant 0 : index
    %98 = vector.load %arg13[%c0_42, %c0_43] : memref<128x32xbf16, #tpu.memory_space<vmem>>, vector<128x32xbf16>
    %cst_44 = arith.constant dense<0.000000e+00> : vector<8x32xf32>
    %99 = tpu.matmul %97, %98, %cst_44 {dimension_numbers = #tpu.dot_dimension_numbers<[1], [0], [0], [1], [0, 0, 1, 1], [], []>} : vector<8x128xbf16>, vector<128x32xbf16>, vector<8x32xf32> -> vector<8x32xf32>
    %c0_45 = arith.constant 0 : index
    %c0_46 = arith.constant 0 : index
    %100 = vector.load %arg14[%c0_45, %c0_46] : memref<1x32xf32, #tpu.memory_space<vmem>>, vector<1x32xf32>
    %101 = vector.broadcast %100 : vector<1x32xf32> to vector<8x32xf32>
    %102 = arith.addf %99, %101 : vector<8x32xf32>
    %103 = arith.addf %102, %61 : vector<8x32xf32>
    %c0_47 = arith.constant 0 : index
    %c0_48 = arith.constant 0 : index
    %c0_49 = arith.constant 0 : index
    %104 = vector.load %arg15[%c0_47, %c0_48, %c0_49] : memref<1x8x32xf32, #tpu.memory_space<vmem>>, vector<1x8x32xf32>
    %105 = vector.shape_cast %104 : vector<1x8x32xf32> to vector<8x32xf32>
    %106 = vector.shape_cast %103 : vector<8x32xf32> to vector<1x8x32xf32>
    tpu.vector_store %arg15[%c0_47, %c0_48, %c0_49], %106 {strides = array<i32>} : memref<1x8x32xf32, #tpu.memory_space<vmem>>, vector<1x8x32xf32>,
    return
  }
  func.func @transform_0(%arg0: i32) -> (i32, i32, i32) {
    %c0_i32 = arith.constant 0 : i32
    %c0_i32_0 = arith.constant 0 : i32
    %c0_i32_1 = arith.constant 0 : i32
    return %arg0, %c0_i32, %c0_i32_0 : i32, i32, i32
  }
  func.func @transform_1(%arg0: i32) -> (i32, i32) {
    %c0_i32 = arith.constant 0 : i32
    %c0_i32_0 = arith.constant 0 : i32
    %c0_i32_1 = arith.constant 0 : i32
    return %c0_i32, %c0_i32_0 : i32, i32
  }
  func.func @transform_2(%arg0: i32) -> (i32, i32) {
    %c0_i32 = arith.constant 0 : i32
    %c0_i32_0 = arith.constant 0 : i32
    %c0_i32_1 = arith.constant 0 : i32
    return %c0_i32, %c0_i32_0 : i32, i32
  }
  func.func @transform_3(%arg0: i32) -> (i32, i32) {
    %c0_i32 = arith.constant 0 : i32
    %c0_i32_0 = arith.constant 0 : i32
    %c0_i32_1 = arith.constant 0 : i32
    return %c0_i32, %c0_i32_0 : i32, i32
  }
  func.func @transform_4(%arg0: i32) -> (i32, i32) {
    %c0_i32 = arith.constant 0 : i32
    %c0_i32_0 = arith.constant 0 : i32
    %c0_i32_1 = arith.constant 0 : i32
    return %c0_i32, %c0_i32_0 : i32, i32
  }
  func.func @transform_5(%arg0: i32) -> (i32, i32) {
    %c0_i32 = arith.constant 0 : i32
    %c0_i32_0 = arith.constant 0 : i32
    %c0_i32_1 = arith.constant 0 : i32
    return %c0_i32, %c0_i32_0 : i32, i32
  }
  func.func @transform_6(%arg0: i32) -> (i32, i32) {
    %c0_i32 = arith.constant 0 : i32
    %c0_i32_0 = arith.constant 0 : i32
    %c0_i32_1 = arith.constant 0 : i32
    return %c0_i32, %c0_i32_0 : i32, i32
  }
  func.func @transform_7(%arg0: i32) -> (i32, i32) {
    %c0_i32 = arith.constant 0 : i32
    %c0_i32_0 = arith.constant 0 : i32
    %c0_i32_1 = arith.constant 0 : i32
    return %c0_i32, %c0_i32_0 : i32, i32
  }
  func.func @transform_8(%arg0: i32) -> (i32, i32) {
    %c0_i32 = arith.constant 0 : i32
    %c0_i32_0 = arith.constant 0 : i32
    %c0_i32_1 = arith.constant 0 : i32
    return %c0_i32, %c0_i32_0 : i32, i32
  }
  func.func @transform_9(%arg0: i32) -> (i32, i32) {
    %c0_i32 = arith.constant 0 : i32
    %c0_i32_0 = arith.constant 0 : i32
    %c0_i32_1 = arith.constant 0 : i32
    return %c0_i32, %c0_i32_0 : i32, i32
  }
  func.func @transform_10(%arg0: i32) -> (i32, i32) {
    %c0_i32 = arith.constant 0 : i32
    %c0_i32_0 = arith.constant 0 : i32
    %c0_i32_1 = arith.constant 0 : i32
    return %c0_i32, %c0_i32_0 : i32, i32
  }
  func.func @transform_11(%arg0: i32) -> (i32, i32) {
    %c0_i32 = arith.constant 0 : i32
    %c0_i32_0 = arith.constant 0 : i32
    %c0_i32_1 = arith.constant 0 : i32
    return %c0_i32, %c0_i32_0 : i32, i32
  }
  func.func @transform_12(%arg0: i32) -> (i32, i32) {
    %c0_i32 = arith.constant 0 : i32
    %c0_i32_0 = arith.constant 0 : i32
    %c0_i32_1 = arith.constant 0 : i32
    return %c0_i32, %c0_i32_0 : i32, i32
  }
  func.func @transform_13(%arg0: i32) -> (i32, i32) {
    %c0_i32 = arith.constant 0 : i32
    %c0_i32_0 = arith.constant 0 : i32
    %c0_i32_1 = arith.constant 0 : i32
    return %c0_i32, %c0_i32_0 : i32, i32
  }
  func.func @transform_14(%arg0: i32) -> (i32, i32, i32) {
    %c0_i32 = arith.constant 0 : i32
    %c0_i32_0 = arith.constant 0 : i32
    %c0_i32_1 = arith.constant 0 : i32
    return %arg0, %c0_i32, %c0_i32_0 : i32, i32, i32
  }
}

</mosaic_0001>

<llo_original>
// kernel: tpu_custom_call.1
$region0: #{tpu_custom_call.1}
  #allocation0 [shape = 'u32[]', space=smem, size = 0x4, offset = 0x4, fixed_abs, tag = 'smem constant byte address 0x4 - core index']
  #allocation1 [shape = 'u32[144,128]{1,0:T(1,128)}', space=vmem, size = 0x12000, scoped, tag = 'internal scratch']
  %s0 = inlined_call_operand.vmem [shape: f32[2,8,32], index: 0, kind: input, shape index: {}]
  %s1 = inlined_call_operand.vmem [shape: f32[8,8], index: 1, kind: input, shape index: {}]
  %s2 = inlined_call_operand.vmem [shape: f32[1,32], index: 2, kind: input, shape index: {}]
  %s3 = inlined_call_operand.vmem [shape: f32[1,32], index: 3, kind: input, shape index: {}]
  %s4 = inlined_call_operand.vmem [shape: bf16[32,96], index: 4, kind: input, shape index: {}]
  %s5 = inlined_call_operand.vmem [shape: f32[1,96], index: 5, kind: input, shape index: {}]
  %s6 = inlined_call_operand.vmem [shape: bf16[32,32], index: 6, kind: input, shape index: {}]
  %s7 = inlined_call_operand.vmem [shape: f32[1,32], index: 7, kind: input, shape index: {}]
  %s8 = inlined_call_operand.vmem [shape: f32[1,32], index: 8, kind: input, shape index: {}]
  %s9 = inlined_call_operand.vmem [shape: f32[1,32], index: 9, kind: input, shape index: {}]
  %s10 = inlined_call_operand.vmem [shape: bf16[32,128], index: 10, kind: input, shape index: {}]
  %s11 = inlined_call_operand.vmem [shape: f32[1,128], index: 11, kind: input, shape index: {}]
  %s12 = inlined_call_operand.vmem [shape: bf16[128,32], index: 12, kind: input, shape index: {}]
  %s13 = inlined_call_operand.vmem [shape: f32[1,32], index: 13, kind: input, shape index: {}]
  %s14 = inlined_call_operand.hbm [shape: f32[2,8,32], index: 14, kind: output, shape index: {}]
  %s15 = sld [smem:[#allocation0]]
  $region89: #{tpu_custom_call.1} parent=0
    _
  %s17 = ssub.s32 1, %s15
  %s18 = scalar_select 0, %s17, %s15
  $region1: #{tpu_custom_call.1} parent=0
    #allocation2 [shape = 'u8[8192]{0}', space=vmem, size = 0x2000, scoped, tag = 'output window, operand 0']
    #allocation3 [shape = 's32[2]{0}', space=sflag, size = 0x8, scoped, tag = 'scoped memory for tpu_custom_call.1']
    %19 = vsyncpa [#allocation3], 0
    %s20 = scalar_lea.sflag [#allocation3], 1
    %21 = vsyncpa %s20, 0
    loop: start=0, step=1, limit=4
    $region2: #{tpu_custom_call.1} parent=1 // loop_pre_header
      _
    $region3: #{tpu_custom_call.1} parent=1 // loop_header
      %s23 = sphi 0, %s27
      %p24 = scmp.ge.s32.totalorder %s23, 4
      %s33 = sphi 0, %s35
      %s36 = sphi 0, %s33
      %s37 = sphi 0, %s36
      %s53 = sphi 0, %s37
      %s57 = sphi 0, %s57
      %s59 = sphi 0, %s57
      %s60 = sphi 0, %s59
      %s74 = sphi 0, %s60
      %s78 = sphi 0, %s78
      %s80 = sphi 0, %s78
      %s81 = sphi 0, %s80
      %s95 = sphi 0, %s81
      %s99 = sphi 0, %s99
      %s101 = sphi 0, %s99
      %s102 = sphi 0, %s101
      %s116 = sphi 0, %s102
      %s120 = sphi 0, %s120
      %s122 = sphi 0, %s120
      %s123 = sphi 0, %s122
      %s137 = sphi 0, %s123
      %s141 = sphi 0, %s141
      %s143 = sphi 0, %s141
      %s144 = sphi 0, %s143
      %s158 = sphi 0, %s144
      %s162 = sphi 0, %s162
      %s164 = sphi 0, %s162
      %s165 = sphi 0, %s164
      %s179 = sphi 0, %s165
      %s183 = sphi 0, %s183
      %s185 = sphi 0, %s183
      %s186 = sphi 0, %s185
      %s200 = sphi 0, %s186
      %s204 = sphi 0, %s204
      %s206 = sphi 0, %s204
      %s207 = sphi 0, %s206
      %s221 = sphi 0, %s207
      %s225 = sphi 0, %s225
      %s227 = sphi 0, %s225
      %s228 = sphi 0, %s227
      %s242 = sphi 0, %s228
      %s246 = sphi 0, %s246
      %s248 = sphi 0, %s246
      %s249 = sphi 0, %s248
      %s263 = sphi 0, %s249
      %s267 = sphi 0, %s267
      %s269 = sphi 0, %s267
      %s270 = sphi 0, %s269
      %s284 = sphi 0, %s270
      %s288 = sphi 0, %s288
      %s290 = sphi 0, %s288
      %s291 = sphi 0, %s290
      %s305 = sphi 0, %s291
      %s309 = sphi 0, %s309
      %s311 = sphi 0, %s309
      %s312 = sphi 0, %s311
      %s326 = sphi 0, %s312
      %s332 = sphi 0, %s334
      %s335 = sphi 0, %s332
      %s336 = sphi 0, %s335
      %s352 = sphi 0, %s336
    $region4: #{tpu_custom_call.1} parent=1 // loop_header_branch
      %26 = sbr.rel (%p24) target = $region8
    $region5: #{tpu_custom_call.1} parent=1 // loop_body
      %s28 = ssub.s32 %s23, 1
      %s29 = ssub.s32 %s23, 2
      %s30 = sadd.s32 %s23, 1
      %s31 = ssub.s32 %s23, %s30
      %p32 = scmp.eq.s32.totalorder %s31, 0
      %s34 = sadd.s32 %s33, 1
      %s35 = scalar_select %p32, %s33, %s34
      %p38 = pneg %p32
      %p39 = scmp.eq.s32.totalorder %s23, 1
      %p40 = por %p38, %p39
      %p41 = scmp.ne.s32.totalorder %s33, %s36
      %p42 = scmp.eq.s32.totalorder %s23, 0
      %p43 = por %p41, %p42
      %p44 = scmp.ne.s32.totalorder %s33, %s36
      %p45 = scmp.eq.s32.totalorder %s28, 1
      %p46 = por %p44, %p45
      %p47 = scmp.ne.s32.totalorder %s36, %s37
      %p48 = scmp.eq.s32.totalorder %s28, 0
      %p49 = por %p47, %p48
      %p50 = scmp.ne.s32.totalorder %s36, %s37
      %p51 = scmp.eq.s32.totalorder %s29, 1
      %p52 = por %p50, %p51
      %p54 = scmp.ne.s32.totalorder %s37, %s53
      %p55 = scmp.eq.s32.totalorder %s29, 0
      %p56 = por %p54, %p55
      %s58 = sadd.s32 %s57, 1
      %p61 = scmp.eq.s32.totalorder %s23, 1
      %p62 = scmp.ne.s32.totalorder %s57, %s59
      %p63 = scmp.eq.s32.totalorder %s23, 0
      %p64 = por %p62, %p63
      %p65 = scmp.ne.s32.totalorder %s57, %s59
      %p66 = scmp.eq.s32.totalorder %s28, 1
      %p67 = por %p65, %p66
      %p68 = scmp.ne.s32.totalorder %s59, %s60
      %p69 = scmp.eq.s32.totalorder %s28, 0
      %p70 = por %p68, %p69
      %p71 = scmp.ne.s32.totalorder %s59, %s60
      %p72 = scmp.eq.s32.totalorder %s29, 1
      %p73 = por %p71, %p72
      %p75 = scmp.ne.s32.totalorder %s60, %s74
      %p76 = scmp.eq.s32.totalorder %s29, 0
      %p77 = por %p75, %p76
      %s79 = sadd.s32 %s78, 1
      %p82 = scmp.eq.s32.totalorder %s23, 1
      %p83 = scmp.ne.s32.totalorder %s78, %s80
      %p84 = scmp.eq.s32.totalorder %s23, 0
      %p85 = por %p83, %p84
      %p86 = scmp.ne.s32.totalorder %s78, %s80
      %p87 = scmp.eq.s32.totalorder %s28, 1
      %p88 = por %p86, %p87
      %p89 = scmp.ne.s32.totalorder %s80, %s81
      %p90 = scmp.eq.s32.totalorder %s28, 0
      %p91 = por %p89, %p90
      %p92 = scmp.ne.s32.totalorder %s80, %s81
      %p93 = scmp.eq.s32.totalorder %s29, 1
      %p94 = por %p92, %p93
      %p96 = scmp.ne.s32.totalorder %s81, %s95
      %p97 = scmp.eq.s32.totalorder %s29, 0
      %p98 = por %p96, %p97
      %s100 = sadd.s32 %s99, 1
      %p103 = scmp.eq.s32.totalorder %s23, 1
      %p104 = scmp.ne.s32.totalorder %s99, %s101
      %p105 = scmp.eq.s32.totalorder %s23, 0
      %p106 = por %p104, %p105
      %p107 = scmp.ne.s32.totalorder %s99, %s101
      %p108 = scmp.eq.s32.totalorder %s28, 1
      %p109 = por %p107, %p108
      %p110 = scmp.ne.s32.totalorder %s101, %s102
      %p111 = scmp.eq.s32.totalorder %s28, 0
      %p112 = por %p110, %p111
      %p113 = scmp.ne.s32.totalorder %s101, %s102
      %p114 = scmp.eq.s32.totalorder %s29, 1
      %p115 = por %p113, %p114
      %p117 = scmp.ne.s32.totalorder %s102, %s116
      %p118 = scmp.eq.s32.totalorder %s29, 0
      %p119 = por %p117, %p118
      %s121 = sadd.s32 %s120, 1
      %p124 = scmp.eq.s32.totalorder %s23, 1
      %p125 = scmp.ne.s32.totalorder %s120, %s122
      %p126 = scmp.eq.s32.totalorder %s23, 0
      %p127 = por %p125, %p126
      %p128 = scmp.ne.s32.totalorder %s120, %s122
      %p129 = scmp.eq.s32.totalorder %s28, 1
      %p130 = por %p128, %p129
      %p131 = scmp.ne.s32.totalorder %s122, %s123
      %p132 = scmp.eq.s32.totalorder %s28, 0
      %p133 = por %p131, %p132
      %p134 = scmp.ne.s32.totalorder %s122, %s123
      %p135 = scmp.eq.s32.totalorder %s29, 1
      %p136 = por %p134, %p135
      %p138 = scmp.ne.s32.totalorder %s123, %s137
      %p139 = scmp.eq.s32.totalorder %s29, 0
      %p140 = por %p138, %p139
      %s142 = sadd.s32 %s141, 1
      %p145 = scmp.eq.s32.totalorder %s23, 1
      %p146 = scmp.ne.s32.totalorder %s141, %s143
      %p147 = scmp.eq.s32.totalorder %s23, 0
      %p148 = por %p146, %p147
      %p149 = scmp.ne.s32.totalorder %s141, %s143
      %p150 = scmp.eq.s32.totalorder %s28, 1
      %p151 = por %p149, %p150
      %p152 = scmp.ne.s32.totalorder %s143, %s144
      %p153 = scmp.eq.s32.totalorder %s28, 0
      %p154 = por %p152, %p153
      %p155 = scmp.ne.s32.totalorder %s143, %s144
      %p156 = scmp.eq.s32.totalorder %s29, 1
      %p157 = por %p155, %p156
      %p159 = scmp.ne.s32.totalorder %s144, %s158
      %p160 = scmp.eq.s32.totalorder %s29, 0
      %p161 = por %p159, %p160
      %s163 = sadd.s32 %s162, 1
      %p166 = scmp.eq.s32.totalorder %s23, 1
      %p167 = scmp.ne.s32.totalorder %s162, %s164
      %p168 = scmp.eq.s32.totalorder %s23, 0
      %p169 = por %p167, %p168
      %p170 = scmp.ne.s32.totalorder %s162, %s164
      %p171 = scmp.eq.s32.totalorder %s28, 1
      %p172 = por %p170, %p171
      %p173 = scmp.ne.s32.totalorder %s164, %s165
      %p174 = scmp.eq.s32.totalorder %s28, 0
      %p175 = por %p173, %p174
      %p176 = scmp.ne.s32.totalorder %s164, %s165
      %p177 = scmp.eq.s32.totalorder %s29, 1
      %p178 = por %p176, %p177
      %p180 = scmp.ne.s32.totalorder %s165, %s179
      %p181 = scmp.eq.s32.totalorder %s29, 0
      %p182 = por %p180, %p181
      %s184 = sadd.s32 %s183, 1
      %p187 = scmp.eq.s32.totalorder %s23, 1
      %p188 = scmp.ne.s32.totalorder %s183, %s185
      %p189 = scmp.eq.s32.totalorder %s23, 0
      %p190 = por %p188, %p189
      %p191 = scmp.ne.s32.totalorder %s183, %s185
      %p192 = scmp.eq.s32.totalorder %s28, 1
      %p193 = por %p191, %p192
      %p194 = scmp.ne.s32.totalorder %s185, %s186
      %p195 = scmp.eq.s32.totalorder %s28, 0
      %p196 = por %p194, %p195
      %p197 = scmp.ne.s32.totalorder %s185, %s186
      %p198 = scmp.eq.s32.totalorder %s29, 1
      %p199 = por %p197, %p198
      %p201 = scmp.ne.s32.totalorder %s186, %s200
      %p202 = scmp.eq.s32.totalorder %s29, 0
      %p203 = por %p201, %p202
      %s205 = sadd.s32 %s204, 1
      %p208 = scmp.eq.s32.totalorder %s23, 1
      %p209 = scmp.ne.s32.totalorder %s204, %s206
      %p210 = scmp.eq.s32.totalorder %s23, 0
      %p211 = por %p209, %p210
      %p212 = scmp.ne.s32.totalorder %s204, %s206
      %p213 = scmp.eq.s32.totalorder %s28, 1
      %p214 = por %p212, %p213
      %p215 = scmp.ne.s32.totalorder %s206, %s207
      %p216 = scmp.eq.s32.totalorder %s28, 0
      %p217 = por %p215, %p216
      %p218 = scmp.ne.s32.totalorder %s206, %s207
      %p219 = scmp.eq.s32.totalorder %s29, 1
      %p220 = por %p218, %p219
      %p222 = scmp.ne.s32.totalorder %s207, %s221
      %p223 = scmp.eq.s32.totalorder %s29, 0
      %p224 = por %p222, %p223
      %s226 = sadd.s32 %s225, 1
      %p229 = scmp.eq.s32.totalorder %s23, 1
      %p230 = scmp.ne.s32.totalorder %s225, %s227
      %p231 = scmp.eq.s32.totalorder %s23, 0
      %p232 = por %p230, %p231
      %p233 = scmp.ne.s32.totalorder %s225, %s227
      %p234 = scmp.eq.s32.totalorder %s28, 1
      %p235 = por %p233, %p234
      %p236 = scmp.ne.s32.totalorder %s227, %s228
      %p237 = scmp.eq.s32.totalorder %s28, 0
      %p238 = por %p236, %p237
      %p239 = scmp.ne.s32.totalorder %s227, %s228
      %p240 = scmp.eq.s32.totalorder %s29, 1
      %p241 = por %p239, %p240
      %p243 = scmp.ne.s32.totalorder %s228, %s242
      %p244 = scmp.eq.s32.totalorder %s29, 0
      %p245 = por %p243, %p244
      %s247 = sadd.s32 %s246, 1
      %p250 = scmp.eq.s32.totalorder %s23, 1
      %p251 = scmp.ne.s32.totalorder %s246, %s248
      %p252 = scmp.eq.s32.totalorder %s23, 0
      %p253 = por %p251, %p252
      %p254 = scmp.ne.s32.totalorder %s246, %s248
      %p255 = scmp.eq.s32.totalorder %s28, 1
      %p256 = por %p254, %p255
      %p257 = scmp.ne.s32.totalorder %s248, %s249
      %p258 = scmp.eq.s32.totalorder %s28, 0
      %p259 = por %p257, %p258
      %p260 = scmp.ne.s32.totalorder %s248, %s249
      %p261 = scmp.eq.s32.totalorder %s29, 1
      %p262 = por %p260, %p261
      %p264 = scmp.ne.s32.totalorder %s249, %s263
      %p265 = scmp.eq.s32.totalorder %s29, 0
      %p266 = por %p264, %p265
      %s268 = sadd.s32 %s267, 1
      %p271 = scmp.eq.s32.totalorder %s23, 1
      %p272 = scmp.ne.s32.totalorder %s267, %s269
      %p273 = scmp.eq.s32.totalorder %s23, 0
      %p274 = por %p272, %p273
      %p275 = scmp.ne.s32.totalorder %s267, %s269
      %p276 = scmp.eq.s32.totalorder %s28, 1
      %p277 = por %p275, %p276
      %p278 = scmp.ne.s32.totalorder %s269, %s270
      %p279 = scmp.eq.s32.totalorder %s28, 0
      %p280 = por %p278, %p279
      %p281 = scmp.ne.s32.totalorder %s269, %s270
      %p282 = scmp.eq.s32.totalorder %s29, 1
      %p283 = por %p281, %p282
      %p285 = scmp.ne.s32.totalorder %s270, %s284
      %p286 = scmp.eq.s32.totalorder %s29, 0
      %p287 = por %p285, %p286
      %s289 = sadd.s32 %s288, 1
      %p292 = scmp.eq.s32.totalorder %s23, 1
      %p293 = scmp.ne.s32.totalorder %s288, %s290
      %p294 = scmp.eq.s32.totalorder %s23, 0
      %p295 = por %p293, %p294
      %p296 = scmp.ne.s32.totalorder %s288, %s290
      %p297 = scmp.eq.s32.totalorder %s28, 1
      %p298 = por %p296, %p297
      %p299 = scmp.ne.s32.totalorder %s290, %s291
      %p300 = scmp.eq.s32.totalorder %s28, 0
      %p301 = por %p299, %p300
      %p302 = scmp.ne.s32.totalorder %s290, %s291
      %p303 = scmp.eq.s32.totalorder %s29, 1
      %p304 = por %p302, %p303
      %p306 = scmp.ne.s32.totalorder %s291, %s305
      %p307 = scmp.eq.s32.totalorder %s29, 0
      %p308 = por %p306, %p307
      %s310 = sadd.s32 %s309, 1
      %p313 = scmp.eq.s32.totalorder %s23, 1
      %p314 = scmp.ne.s32.totalorder %s309, %s311
      %p315 = scmp.eq.s32.totalorder %s23, 0
      %p316 = por %p314, %p315
      %p317 = scmp.ne.s32.totalorder %s309, %s311
      %p318 = scmp.eq.s32.totalorder %s28, 1
      %p319 = por %p317, %p318
      %p320 = scmp.ne.s32.totalorder %s311, %s312
      %p321 = scmp.eq.s32.totalorder %s28, 0
      %p322 = por %p320, %p321
      %p323 = scmp.ne.s32.totalorder %s311, %s312
      %p324 = scmp.eq.s32.totalorder %s29, 1
      %p325 = por %p323, %p324
      %p327 = scmp.ne.s32.totalorder %s312, %s326
      %p328 = scmp.eq.s32.totalorder %s29, 0
      %p329 = por %p327, %p328
      %s330 = ssub.s32 %s23, %s30
      %p331 = scmp.eq.s32.totalorder %s330, 0
      %s333 = sadd.s32 %s332, 1
      %s334 = scalar_select %p331, %s332, %s333
      %p337 = pneg %p331
      %p338 = scmp.eq.s32.totalorder %s23, 1
      %p339 = por %p337, %p338
      %p340 = scmp.ne.s32.totalorder %s332, %s335
      %p341 = scmp.eq.s32.totalorder %s23, 0
      %p342 = por %p340, %p341
      %p343 = scmp.ne.s32.totalorder %s332, %s335
      %p344 = scmp.eq.s32.totalorder %s28, 1
      %p345 = por %p343, %p344
      %p346 = scmp.ne.s32.totalorder %s335, %s336
      %p347 = scmp.eq.s32.totalorder %s28, 0
      %p348 = por %p346, %p347
      %p349 = scmp.ne.s32.totalorder %s335, %s336
      %p350 = scmp.eq.s32.totalorder %s29, 1
      %p351 = por %p349, %p350
      %p353 = scmp.ne.s32.totalorder %s336, %s352
      %p354 = scmp.eq.s32.totalorder %s29, 0
      %p355 = por %p353, %p354
      %p356 = scmp.le.s32.totalorder 1, %s23
      %p357 = scmp.lt.s32.totalorder %s23, 3
      %p358 = pnand %p356, %p357
      %p359 = pneg %p358
      // Predicated region
      $region9: #{tpu_custom_call.1} parent=5 // pred_check
        _
      $region10: #{tpu_custom_call.1} parent=5 // pred_check_branch
        %361 = sbr.rel (%p358) target = $region12
      $region11: #{tpu_custom_call.1} parent=5 // pred_region
        %s362 = ssub.s32 %s23, 1
        // Predicated region
        $region13: #{tpu_custom_call.1} parent=11 // pred_check
          %p363 = pneg %p70
        $region14: #{tpu_custom_call.1} parent=11 // pred_check_branch
          %365 = sbr.rel (%p363) target = $region16
        $region15: #{tpu_custom_call.1} parent=11 // pred_region
          _
        $region16: #{tpu_custom_call.1} parent=11 // pred_fallthru
          _
        // Predicated region
        $region17: #{tpu_custom_call.1} parent=11 // pred_check
          %p366 = pneg %p91
        $region18: #{tpu_custom_call.1} parent=11 // pred_check_branch
          %368 = sbr.rel (%p366) target = $region20
        $region19: #{tpu_custom_call.1} parent=11 // pred_region
          _
        $region20: #{tpu_custom_call.1} parent=11 // pred_fallthru
          _
        // Predicated region
        $region21: #{tpu_custom_call.1} parent=11 // pred_check
          %p369 = pneg %p112
        $region22: #{tpu_custom_call.1} parent=11 // pred_check_branch
          %371 = sbr.rel (%p369) target = $region24
        $region23: #{tpu_custom_call.1} parent=11 // pred_region
          _
        $region24: #{tpu_custom_call.1} parent=11 // pred_fallthru
          _
        // Predicated region
        $region25: #{tpu_custom_call.1} parent=11 // pred_check
          %p372 = pneg %p133
        $region26: #{tpu_custom_call.1} parent=11 // pred_check_branch
          %374 = sbr.rel (%p372) target = $region28
        $region27: #{tpu_custom_call.1} parent=11 // pred_region
          _
        $region28: #{tpu_custom_call.1} parent=11 // pred_fallthru
          _
        // Predicated region
        $region29: #{tpu_custom_call.1} parent=11 // pred_check
          %p375 = pneg %p154
        $region30: #{tpu_custom_call.1} parent=11 // pred_check_branch
          %377 = sbr.rel (%p375) target = $region32
        $region31: #{tpu_custom_call.1} parent=11 // pred_region
          _
        $region32: #{tpu_custom_call.1} parent=11 // pred_fallthru
          _
        // Predicated region
        $region33: #{tpu_custom_call.1} parent=11 // pred_check
          %p378 = pneg %p175
        $region34: #{tpu_custom_call.1} parent=11 // pred_check_branch
          %380 = sbr.rel (%p378) target = $region36
        $region35: #{tpu_custom_call.1} parent=11 // pred_region
          _
        $region36: #{tpu_custom_call.1} parent=11 // pred_fallthru
          _
        // Predicated region
        $region37: #{tpu_custom_call.1} parent=11 // pred_check
          %p381 = pneg %p196
        $region38: #{tpu_custom_call.1} parent=11 // pred_check_branch
          %383 = sbr.rel (%p381) target = $region40
        $region39: #{tpu_custom_call.1} parent=11 // pred_region
          _
        $region40: #{tpu_custom_call.1} parent=11 // pred_fallthru
          _
        // Predicated region
        $region41: #{tpu_custom_call.1} parent=11 // pred_check
          %p384 = pneg %p217
        $region42: #{tpu_custom_call.1} parent=11 // pred_check_branch
          %386 = sbr.rel (%p384) target = $region44
        $region43: #{tpu_custom_call.1} parent=11 // pred_region
          _
        $region44: #{tpu_custom_call.1} parent=11 // pred_fallthru
          _
        // Predicated region
        $region45: #{tpu_custom_call.1} parent=11 // pred_check
          %p387 = pneg %p238
        $region46: #{tpu_custom_call.1} parent=11 // pred_check_branch
          %389 = sbr.rel (%p387) target = $region48
        $region47: #{tpu_custom_call.1} parent=11 // pred_region
          _
        $region48: #{tpu_custom_call.1} parent=11 // pred_fallthru
          _
        // Predicated region
        $region49: #{tpu_custom_call.1} parent=11 // pred_check
          %p390 = pneg %p259
        $region50: #{tpu_custom_call.1} parent=11 // pred_check_branch
          %392 = sbr.rel (%p390) target = $region52
        $region51: #{tpu_custom_call.1} parent=11 // pred_region
          _
        $region52: #{tpu_custom_call.1} parent=11 // pred_fallthru
          _
        // Predicated region
        $region53: #{tpu_custom_call.1} parent=11 // pred_check
          %p393 = pneg %p280
        $region54: #{tpu_custom_call.1} parent=11 // pred_check_branch
          %395 = sbr.rel (%p393) target = $region56
        $region55: #{tpu_custom_call.1} parent=11 // pred_region
          _
        $region56: #{tpu_custom_call.1} parent=11 // pred_fallthru
          _
        // Predicated region
        $region57: #{tpu_custom_call.1} parent=11 // pred_check
          %p396 = pneg %p301
        $region58: #{tpu_custom_call.1} parent=11 // pred_check_branch
          %398 = sbr.rel (%p396) target = $region60
        $region59: #{tpu_custom_call.1} parent=11 // pred_region
          _
        $region60: #{tpu_custom_call.1} parent=11 // pred_fallthru
          _
        // Predicated region
        $region61: #{tpu_custom_call.1} parent=11 // pred_check
          %p399 = pneg %p322
        $region62: #{tpu_custom_call.1} parent=11 // pred_check_branch
          %401 = sbr.rel (%p399) target = $region64
        $region63: #{tpu_custom_call.1} parent=11 // pred_region
          _
        $region64: #{tpu_custom_call.1} parent=11 // pred_fallthru
          _
      $region12: #{tpu_custom_call.1} parent=5 // pred_fallthru
        _
      %p402 = scmp.lt.s32.totalorder %s23, 2
      // Predicated region
      $region65: #{tpu_custom_call.1} parent=5 // pred_check
        %p403 = pneg %p402
      $region66: #{tpu_custom_call.1} parent=5 // pred_check_branch
        %405 = sbr.rel (%p403) target = $region68
      $region67: #{tpu_custom_call.1} parent=5 // pred_region
        // Predicated region
        $region69: #{tpu_custom_call.1} parent=67 // pred_check
          %p406 = pneg %p43
        $region70: #{tpu_custom_call.1} parent=67 // pred_check_branch
          %408 = sbr.rel (%p406) target = $region72
        $region71: #{tpu_custom_call.1} parent=67 // pred_region
          %p409 = scmp.lt.s32.totalorder %s23, 1
          %s410 = scalar_select %p409, %s23, 1
          %s411 = smul.addr %s410, 8
          %s412 = scalar_lea.vmem %s0, %s411
        $region72: #{tpu_custom_call.1} parent=67 // pred_fallthru
          _
      $region68: #{tpu_custom_call.1} parent=5 // pred_fallthru
        _
      %p413 = scmp.le.s32.totalorder 1, %s23
      %p414 = scmp.lt.s32.totalorder %s23, 3
      %p415 = pnand %p413, %p414
      %p416 = pneg %p415
      // Predicated region
      $region73: #{tpu_custom_call.1} parent=5 // pred_check
        _
      $region74: #{tpu_custom_call.1} parent=5 // pred_check_branch
        %418 = sbr.rel (%p415) target = $region76
      $region75: #{tpu_custom_call.1} parent=5 // pred_region
        %s419 = ssub.s32 %s23, 1
        %p420 = scmp.lt.s32.totalorder %s28, 1
        %s421 = scalar_select %p420, %s28, 1
        %s422 = smul.addr %s421, 8
        %s423 = scalar_lea.vmem %s0, %s422
        %p424 = pneg %p49
        %p425 = pneg %p46
        %p426 = pneg %p70
        %p427 = pneg %p67
        %p428 = pneg %p91
        %p429 = pneg %p88
        %p430 = pneg %p112
        %p431 = pneg %p109
        %p432 = pneg %p133
        %p433 = pneg %p130
        %p434 = pneg %p154
        %p435 = pneg %p151
        %p436 = pneg %p175
        %p437 = pneg %p172
        %p438 = pneg %p196
        %p439 = pneg %p193
        %p440 = pneg %p217
        %p441 = pneg %p214
        %p442 = pneg %p238
        %p443 = pneg %p235
        %p444 = pneg %p259
        %p445 = pneg %p256
        %p446 = pneg %p280
        %p447 = pneg %p277
        %p448 = pneg %p301
        %p449 = pneg %p298
        %p450 = pneg %p322
        %p451 = pneg %p319
        %p452 = pneg %p348
        %p453 = pneg %p345
        %s454 = sand.u32 %s335, 1
        %s455 = scalar_lea.sflag [#allocation3], %s454
        %s456 = sand.u32 %s335, 1
        %s457 = smul.addr %s456, 8
        %s458 = scalar_lea.vmem [#allocation2], %s457
        %p459 = scmp.lt.s32.totalorder %s28, 1
        %s460 = scalar_select %p459, %s28, 1
        %s461 = smul.addr %s460, 8
        %s462 = scalar_lea.vmem %s0, %s461
        %v464 = vld [vmem:[%s462] sm:$0xff]
        %v465 = vld [vmem:[%s2] sm:$0x1]
        %v466 = vld [vmem:[%s3] sm:$0x1]
        %vm467 = vcmask 261120
        %v468 = vsel %vm467, %v464, 0.0
        %469 = vadd.xlane.f32.xlu0 %v468
        %v470 = vpop.xlane.xlu0 %469
        %v471 = vrcp.pop 32.0
        %v472 = vmul.f32 %v470, %v471
        %v473 = vsub.f32 %v464, %v472
        %v474 = vmul.f32 %v473, %v473
        %v475 = vsel %vm467, %v474, 0.0
        %476 = vadd.xlane.f32.xlu0 %v475
        %v477 = vpop.xlane.xlu0 %476
        %v478 = vmul.f32 %v477, %v471
        %v479 = vadd.f32 %v478, 1e-05
        %v480 = vrsqrt.pop %v479
        %v481 = vmul.f32 %v473, %v480
        %v483 = vlaneseq
        %v484 = vshrl.u32 %v483, 7
        %v485 = vsub.s32 0, %v484
        %v486 = vrot.slane %v465, %v485
        %v488 = vmul.f32 %v481, %v486
        %v490 = vlaneseq
        %v491 = vshrl.u32 %v490, 7
        %v492 = vsub.s32 0, %v491
        %v493 = vrot.slane %v466, %v492
        %v495 = vadd.f32 %v488, %v493
        %v496 = vpack.c.bf16 %v495, %v495
        %v497 = vld [vmem:[%s4] sm:$0xf]
        %v498 = vld [vmem:[%s4 + $0x4] sm:$0xf]
        %v499 = vld [vmem:[%s4 + $0x8] sm:$0xf]
        %v500 = vld [vmem:[%s4 + $0xc] sm:$0xf]
        %v501 = vld [vmem:[%s5] sm:$0x1]
        %v503 = vlaneseq
        %v504 = vshrl.u32 %v503, 7
        %v505 = vsub.s32 0, %v504
        %v506 = vrot.slane %v501, %v505
        %v512 = vunpack.c.l.b16 %v497
        %v513 = vunpack.c.l.b16 %v498
        %v514 = vunpack.c.l.b16 %v499
        %v515 = vunpack.c.l.b16 %v500
        %v516 = vpack.c.b16 %v513, %v512
        %v517 = vpack.c.b16 %v515, %v514
        %v521 = vsel %vm467, %v496, 0
        %523 = vmatprep.subr.bf16.mxu0 0
        %524 = vmatpush1.bf16.msra.mxu0 %v516
        %525 = vmatprep.subr.bf16.mxu0 0
        %526 = vmatpush1.bf16.msra.mxu0 %v517
        %527 = vmatprep.subr.bf16.mxu0 0
        %528 = vmatpush1.bf16.msra.mxu0 0
        %529 = vmatprep.subr.bf16.mxu0 0
        %530 = vmatpush1.bf16.msra.mxu0 0
        %531 = vmatprep.subr.bf16.mxu0 0
        %532 = vmatpush1.bf16.msra.mxu0 0
        %533 = vmatprep.subr.bf16.mxu0 0
        %534 = vmatpush1.bf16.msra.mxu0 0
        %535 = vmatprep.subr.bf16.mxu0 0
        %536 = vmatpush1.bf16.msra.mxu0 0
        %537 = vmatprep.subr.bf16.mxu0 0
        %538 = vmatpush1.bf16.msra.mxu0 0
        %539 = vmatprep.subr.bf16.mxu0 0
        %540 = vmatpush1.bf16.msra.mxu0 0
        %541 = vmatprep.subr.bf16.mxu0 0
        %542 = vmatpush1.bf16.msra.mxu0 0
        %543 = vmatprep.subr.bf16.mxu0 0
        %544 = vmatpush1.bf16.msra.mxu0 0
        %545 = vmatprep.subr.bf16.mxu0 0
        %546 = vmatpush1.bf16.msra.mxu0 0
        %547 = vmatprep.subr.bf16.mxu0 0
        %548 = vmatpush1.bf16.msra.mxu0 0
        %549 = vmatprep.subr.bf16.mxu0 0
        %550 = vmatpush1.bf16.msra.mxu0 0
        %551 = vmatprep.subr.bf16.mxu0 0
        %552 = vmatpush1.bf16.msra.mxu0 0
        %553 = vmatprep.subr.bf16.mxu0 0
        %554 = vmatpush1.bf16.msra.mxu0 0
        %555 = vmatprep.mubr.bf16.mxu0 0
        %556 = vmatmul.mubr.bf16.gmra.mrb[0].mxu0 %v521
        %v557 = vpop.f32.mrb[0].mxu0
        %v558 = vadd.f32 %v506, %v557
        %v559 = vpop.f32.mrb[0].mxu0
        %v560 = vpop.f32.mrb[0].mxu0
        %v561 = vpop.f32.mrb[0].mxu0
        %562 = vdwg.mxu0
        %v563 = vpack.c.bf16 %v558, %v558
        %565 = vrot.lane.b32.xlu0 %v563, 120
        %v566 = vpop.permute.xlu0 %565
        %568 = vrot.lane.b32.xlu0 %v563, 112
        %v569 = vpop.permute.xlu0 %568
        %571 = vrot.lane.b32.xlu0 %v563, 104
        %v572 = vpop.permute.xlu0 %571
        %574 = vrot.lane.b32.xlu0 %v563, 96
        %v575 = vpop.permute.xlu0 %574
        %577 = vrot.lane.b32.xlu0 %v563, 88
        %v578 = vpop.permute.xlu0 %577
        %580 = vrot.lane.b32.xlu0 %v563, 80
        %v581 = vpop.permute.xlu0 %580
        %583 = vrot.lane.b32.xlu0 %v563, 72
        %v584 = vpop.permute.xlu0 %583
        %586 = vrot.lane.b32.xlu0 %v563, 64
        %v587 = vpop.permute.xlu0 %586
        %588 = vrot.lane.b32.xlu0 %v563, 56
        %v589 = vpop.permute.xlu0 %588
        %590 = vrot.lane.b32.xlu0 %v563, 48
        %v591 = vpop.permute.xlu0 %590
        %592 = vrot.lane.b32.xlu0 %v563, 40
        %v593 = vpop.permute.xlu0 %592
        %v594 = vcombine.low %v563, %v575
        %v596 = vunpack.c.l.s4 1983009808
        %v597 = vunpack.c.0.s8 %v596
        %v598 = vlaneseq
        %v599 = vshrl.u32 %v598, 7
        %v600 = vsub.s32 %v597, %v599
        %v601 = vrot.slane %v594, %v600
        %v602 = vcombine.low %v569, %v581
        %v604 = vunpack.c.l.s4 1983009808
        %v605 = vunpack.c.0.s8 %v604
        %v606 = vlaneseq
        %v607 = vshrl.u32 %v606, 7
        %v608 = vsub.s32 %v605, %v607
        %v609 = vrot.slane %v602, %v608
        %v612 = vunpack.c.l.s4 1983009808
        %v613 = vunpack.c.0.s8 %v612
        %v614 = vlaneseq
        %v615 = vshrl.u32 %v614, 7
        %v616 = vsub.s32 %v613, %v615
        %v617 = vrot.slane %v587, %v616
        %v620 = vunpack.c.l.s4 1983009808
        %v621 = vunpack.c.0.s8 %v620
        %v622 = vlaneseq
        %v623 = vshrl.u32 %v622, 7
        %v624 = vsub.s32 %v621, %v623
        %v625 = vrot.slane %v591, %v624
        %v626 = vcombine.low %v601, %v609
        %v627 = vcombine.high %v601, %v609
        %v629 = vunpack.c.l.s4 1934713408
        %v630 = vunpack.c.0.s8 %v629
        %v631 = vlaneseq
        %v632 = vshrl.u32 %v631, 7
        %v633 = vsub.s32 %v630, %v632
        %v634 = vrot.slane %v626, %v633
        %v636 = vunpack.c.l.s4 1934713408
        %v637 = vunpack.c.0.s8 %v636
        %v638 = vlaneseq
        %v639 = vshrl.u32 %v638, 7
        %v640 = vsub.s32 %v637, %v639
        %v641 = vrot.slane %v627, %v640
        %v642 = vcombine.low %v617, %v625
        %v643 = vcombine.high %v617, %v625
        %v645 = vunpack.c.l.s4 1934713408
        %v646 = vunpack.c.0.s8 %v645
        %v647 = vlaneseq
        %v648 = vshrl.u32 %v647, 7
        %v649 = vsub.s32 %v646, %v648
        %v650 = vrot.slane %v642, %v649
        %v652 = vunpack.c.l.s4 1934713408
        %v653 = vunpack.c.0.s8 %v652
        %v654 = vlaneseq
        %v655 = vshrl.u32 %v654, 7
        %v656 = vsub.s32 %v653, %v655
        %v657 = vrot.slane %v643, %v656
        %v658 = vcombine.low %v634, %v650
        %v659 = vcombine.high %v634, %v650
        %v660 = vcombine.low %v641, %v657
        %v661 = vcombine.high %v641, %v657
        %v662 = vcombine.low %v566, %v578
        %v664 = vunpack.c.l.s4 1983009808
        %v665 = vunpack.c.0.s8 %v664
        %v666 = vlaneseq
        %v667 = vshrl.u32 %v666, 7
        %v668 = vsub.s32 %v665, %v667
        %v669 = vrot.slane %v662, %v668
        %v670 = vcombine.low %v572, %v584
        %v672 = vunpack.c.l.s4 1983009808
        %v673 = vunpack.c.0.s8 %v672
        %v674 = vlaneseq
        %v675 = vshrl.u32 %v674, 7
        %v676 = vsub.s32 %v673, %v675
        %v677 = vrot.slane %v670, %v676
        %v680 = vunpack.c.l.s4 1983009808
        %v681 = vunpack.c.0.s8 %v680
        %v682 = vlaneseq
        %v683 = vshrl.u32 %v682, 7
        %v684 = vsub.s32 %v681, %v683
        %v685 = vrot.slane %v589, %v684
        %v688 = vunpack.c.l.s4 1983009808
        %v689 = vunpack.c.0.s8 %v688
        %v690 = vlaneseq
        %v691 = vshrl.u32 %v690, 7
        %v692 = vsub.s32 %v689, %v691
        %v693 = vrot.slane %v593, %v692
        %v694 = vcombine.low %v669, %v677
        %v695 = vcombine.high %v669, %v677
        %v697 = vunpack.c.l.s4 1934713408
        %v698 = vunpack.c.0.s8 %v697
        %v699 = vlaneseq
        %v700 = vshrl.u32 %v699, 7
        %v701 = vsub.s32 %v698, %v700
        %v702 = vrot.slane %v694, %v701
        %v704 = vunpack.c.l.s4 1934713408
        %v705 = vunpack.c.0.s8 %v704
        %v706 = vlaneseq
        %v707 = vshrl.u32 %v706, 7
        %v708 = vsub.s32 %v705, %v707
        %v709 = vrot.slane %v695, %v708
        %v710 = vcombine.low %v685, %v693
        %v711 = vcombine.high %v685, %v693
        %v713 = vunpack.c.l.s4 1934713408
        %v714 = vunpack.c.0.s8 %v713
        %v715 = vlaneseq
        %v716 = vshrl.u32 %v715, 7
        %v717 = vsub.s32 %v714, %v716
        %v718 = vrot.slane %v710, %v717
        %v720 = vunpack.c.l.s4 1934713408
        %v721 = vunpack.c.0.s8 %v720
        %v722 = vlaneseq
        %v723 = vshrl.u32 %v722, 7
        %v724 = vsub.s32 %v721, %v723
        %v725 = vrot.slane %v711, %v724
        %v726 = vcombine.low %v702, %v718
        %v727 = vcombine.high %v702, %v718
        %v728 = vcombine.low %v709, %v725
        %v729 = vcombine.high %v709, %v725
        %v732 = vpack.i.b16 %v726, %v658
        %v734 = vshrl.u32 %v658, 16
        %v735 = vshrl.u32 %v726, 16
        %v736 = vpack.i.b16 %v735, %v734
        %v740 = vpack.i.b16 %v727, %v659
        %v742 = vshrl.u32 %v659, 16
        %v743 = vshrl.u32 %v727, 16
        %v744 = vpack.i.b16 %v743, %v742
        %v748 = vpack.i.b16 %v728, %v660
        %v750 = vshrl.u32 %v660, 16
        %v751 = vshrl.u32 %v728, 16
        %v752 = vpack.i.b16 %v751, %v750
        %v756 = vpack.i.b16 %v729, %v661
        %v758 = vshrl.u32 %v661, 16
        %v759 = vshrl.u32 %v729, 16
        %v760 = vpack.i.b16 %v759, %v758
        %v762 = vcombine.low %v732, %v748
        %v763 = vcombine.high %v732, %v748
        %v765 = vunpack.c.l.s4 1983009808
        %v766 = vunpack.c.0.s8 %v765
        %v767 = vlaneseq
        %v768 = vshrl.u32 %v767, 7
        %v769 = vsub.s32 %v766, %v768
        %v770 = vrot.slane %v762, %v769
        %v772 = vunpack.c.l.s4 1983009808
        %v773 = vunpack.c.0.s8 %v772
        %v774 = vlaneseq
        %v775 = vshrl.u32 %v774, 7
        %v776 = vsub.s32 %v773, %v775
        %v777 = vrot.slane %v763, %v776
        %v778 = vcombine.low %v740, %v756
        %v779 = vcombine.high %v740, %v756
        %v781 = vunpack.c.l.s4 1983009808
        %v782 = vunpack.c.0.s8 %v781
        %v783 = vlaneseq
        %v784 = vshrl.u32 %v783, 7
        %v785 = vsub.s32 %v782, %v784
        %v786 = vrot.slane %v778, %v785
        %v788 = vunpack.c.l.s4 1983009808
        %v789 = vunpack.c.0.s8 %v788
        %v790 = vlaneseq
        %v791 = vshrl.u32 %v790, 7
        %v792 = vsub.s32 %v789, %v791
        %v793 = vrot.slane %v779, %v792
        %v794 = vcombine.low %v770, %v786
        %v795 = vcombine.high %v770, %v786
        %v797 = vunpack.c.l.s4 1934713408
        %v798 = vunpack.c.0.s8 %v797
        %v799 = vlaneseq
        %v800 = vshrl.u32 %v799, 7
        %v801 = vsub.s32 %v798, %v800
        %v802 = vrot.slane %v794, %v801
        %v804 = vunpack.c.l.s4 1934713408
        %v805 = vunpack.c.0.s8 %v804
        %v806 = vlaneseq
        %v807 = vshrl.u32 %v806, 7
        %v808 = vsub.s32 %v805, %v807
        %v809 = vrot.slane %v795, %v808
        %v810 = vcombine.low %v777, %v793
        %v812 = vunpack.c.l.s4 1934713408
        %v813 = vunpack.c.0.s8 %v812
        %v814 = vlaneseq
        %v815 = vshrl.u32 %v814, 7
        %v816 = vsub.s32 %v813, %v815
        %v817 = vrot.slane %v810, %v816
        %v818 = vcombine.high %v802, 0
        %v819 = vcombine.high %v809, 0
        %v820 = vcombine.high %v817, 0
        %v821 = vcombine.low %v736, %v752
        %v822 = vcombine.high %v736, %v752
        %v824 = vunpack.c.l.s4 1983009808
        %v825 = vunpack.c.0.s8 %v824
        %v826 = vlaneseq
        %v827 = vshrl.u32 %v826, 7
        %v828 = vsub.s32 %v825, %v827
        %v829 = vrot.slane %v821, %v828
        %v831 = vunpack.c.l.s4 1983009808
        %v832 = vunpack.c.0.s8 %v831
        %v833 = vlaneseq
        %v834 = vshrl.u32 %v833, 7
        %v835 = vsub.s32 %v832, %v834
        %v836 = vrot.slane %v822, %v835
        %v837 = vcombine.low %v744, %v760
        %v838 = vcombine.high %v744, %v760
        %v840 = vunpack.c.l.s4 1983009808
        %v841 = vunpack.c.0.s8 %v840
        %v842 = vlaneseq
        %v843 = vshrl.u32 %v842, 7
        %v844 = vsub.s32 %v841, %v843
        %v845 = vrot.slane %v837, %v844
        %v847 = vunpack.c.l.s4 1983009808
        %v848 = vunpack.c.0.s8 %v847
        %v849 = vlaneseq
        %v850 = vshrl.u32 %v849, 7
        %v851 = vsub.s32 %v848, %v850
        %v852 = vrot.slane %v838, %v851
        %v853 = vcombine.low %v829, %v845
        %v854 = vcombine.high %v829, %v845
        %v856 = vunpack.c.l.s4 1934713408
        %v857 = vunpack.c.0.s8 %v856
        %v858 = vlaneseq
        %v859 = vshrl.u32 %v858, 7
        %v860 = vsub.s32 %v857, %v859
        %v861 = vrot.slane %v853, %v860
        %v863 = vunpack.c.l.s4 1934713408
        %v864 = vunpack.c.0.s8 %v863
        %v865 = vlaneseq
        %v866 = vshrl.u32 %v865, 7
        %v867 = vsub.s32 %v864, %v866
        %v868 = vrot.slane %v854, %v867
        %v869 = vcombine.low %v836, %v852
        %v871 = vunpack.c.l.s4 1934713408
        %v872 = vunpack.c.0.s8 %v871
        %v873 = vlaneseq
        %v874 = vshrl.u32 %v873, 7
        %v875 = vsub.s32 %v872, %v874
        %v876 = vrot.slane %v869, %v875
        %v877 = vcombine.high %v861, 0
        %v878 = vcombine.high %v868, 0
        %v879 = vcombine.high %v876, 0
        %v882 = vpack.i.b16 %v861, %v802
        %v883 = vshrl.u32 %v802, 16
        %v884 = vshrl.u32 %v861, 16
        %v885 = vpack.i.b16 %v884, %v883
        %v888 = vpack.i.b16 %v877, %v818
        %v889 = vshrl.u32 %v818, 16
        %v890 = vshrl.u32 %v877, 16
        %v891 = vpack.i.b16 %v890, %v889
        %v894 = vpack.i.b16 %v868, %v809
        %v895 = vshrl.u32 %v809, 16
        %v896 = vshrl.u32 %v868, 16
        %v897 = vpack.i.b16 %v896, %v895
        %v900 = vpack.i.b16 %v878, %v819
        %v901 = vshrl.u32 %v819, 16
        %v902 = vshrl.u32 %v878, 16
        %v903 = vpack.i.b16 %v902, %v901
        %v906 = vpack.i.b16 %v876, %v817
        %v907 = vshrl.u32 %v817, 16
        %v908 = vshrl.u32 %v876, 16
        %v909 = vpack.i.b16 %v908, %v907
        %v912 = vpack.i.b16 %v879, %v820
        %v913 = vshrl.u32 %v820, 16
        %v914 = vshrl.u32 %v879, 16
        %v915 = vpack.i.b16 %v914, %v913
        %v916 = vld [vmem:[%s1] sm:$0xff]
        %vm917 = vcmask 64512
        %v919 = vsel %vm917, %v882, 0
        %v922 = vsel %vm917, %v894, 0
        %924 = vmatprep.subr.bf16.mxu0 0
        %925 = vmatpush1.bf16.xpose.msra.mxu0 %v922
        %926 = vmatprep.subr.bf16.mxu0 0
        %927 = vmatpush1.bf16.xpose.msra.mxu0 0
        %928 = vmatprep.subr.bf16.mxu0 0
        %929 = vmatpush1.bf16.xpose.msra.mxu0 0
        %930 = vmatprep.subr.bf16.mxu0 0
        %931 = vmatpush1.bf16.xpose.msra.mxu0 0
        %932 = vmatprep.subr.bf16.mxu0 0
        %933 = vmatpush1.bf16.xpose.msra.mxu0 0
        %934 = vmatprep.subr.bf16.mxu0 0
        %935 = vmatpush1.bf16.xpose.msra.mxu0 0
        %936 = vmatprep.subr.bf16.mxu0 0
        %937 = vmatpush1.bf16.xpose.msra.mxu0 0
        %938 = vmatprep.subr.bf16.mxu0 0
        %939 = vmatpush1.bf16.xpose.msra.mxu0 0
        %940 = vmatprep.subr.bf16.mxu0 0
        %941 = vmatpush1.bf16.xpose.msra.mxu0 0
        %942 = vmatprep.subr.bf16.mxu0 0
        %943 = vmatpush1.bf16.xpose.msra.mxu0 0
        %944 = vmatprep.subr.bf16.mxu0 0
        %945 = vmatpush1.bf16.xpose.msra.mxu0 0
        %946 = vmatprep.subr.bf16.mxu0 0
        %947 = vmatpush1.bf16.xpose.msra.mxu0 0
        %948 = vmatprep.subr.bf16.mxu0 0
        %949 = vmatpush1.bf16.xpose.msra.mxu0 0
        %950 = vmatprep.subr.bf16.mxu0 0
        %951 = vmatpush1.bf16.xpose.msra.mxu0 0
        %952 = vmatprep.subr.bf16.mxu0 0
        %953 = vmatpush1.bf16.xpose.msra.mxu0 0
        %954 = vmatprep.subr.bf16.mxu0 0
        %955 = vmatpush1.bf16.xpose.msra.mxu0 0
        %956 = vmatprep.mubr.bf16.mxu0 0
        %957 = vmatmul.mubr.bf16.gmra.mrb[0].mxu0 %v919
        %v958 = vpop.f32.mrb[0].mxu0
        %v959 = vadd.f32 %v916, %v958
        %v960 = vpop.f32.mrb[0].mxu0
        %v961 = vpop.f32.mrb[0].mxu0
        %v962 = vpop.f32.mrb[0].mxu0
        %963 = vdwg.mxu0
        %v965 = vsel %vm917, %v885, 0
        %v968 = vsel %vm917, %v897, 0
        %970 = vmatprep.subr.bf16.mxu0 0
        %971 = vmatpush1.bf16.xpose.msra.mxu0 %v968
        %972 = vmatprep.subr.bf16.mxu0 0
        %973 = vmatpush1.bf16.xpose.msra.mxu0 0
        %974 = vmatprep.subr.bf16.mxu0 0
        %975 = vmatpush1.bf16.xpose.msra.mxu0 0
        %976 = vmatprep.subr.bf16.mxu0 0
        %977 = vmatpush1.bf16.xpose.msra.mxu0 0
        %978 = vmatprep.subr.bf16.mxu0 0
        %979 = vmatpush1.bf16.xpose.msra.mxu0 0
        %980 = vmatprep.subr.bf16.mxu0 0
        %981 = vmatpush1.bf16.xpose.msra.mxu0 0
        %982 = vmatprep.subr.bf16.mxu0 0
        %983 = vmatpush1.bf16.xpose.msra.mxu0 0
        %984 = vmatprep.subr.bf16.mxu0 0
        %985 = vmatpush1.bf16.xpose.msra.mxu0 0
        %986 = vmatprep.subr.bf16.mxu0 0
        %987 = vmatpush1.bf16.xpose.msra.mxu0 0
        %988 = vmatprep.subr.bf16.mxu0 0
        %989 = vmatpush1.bf16.xpose.msra.mxu0 0
        %990 = vmatprep.subr.bf16.mxu0 0
        %991 = vmatpush1.bf16.xpose.msra.mxu0 0
        %992 = vmatprep.subr.bf16.mxu0 0
        %993 = vmatpush1.bf16.xpose.msra.mxu0 0
        %994 = vmatprep.subr.bf16.mxu0 0
        %995 = vmatpush1.bf16.xpose.msra.mxu0 0
        %996 = vmatprep.subr.bf16.mxu0 0
        %997 = vmatpush1.bf16.xpose.msra.mxu0 0
        %998 = vmatprep.subr.bf16.mxu0 0
        %999 = vmatpush1.bf16.xpose.msra.mxu0 0
        %1000 = vmatprep.subr.bf16.mxu0 0
        %1001 = vmatpush1.bf16.xpose.msra.mxu0 0
        %1002 = vmatprep.mubr.bf16.mxu0 0
        %1003 = vmatmul.mubr.bf16.gmra.mrb[0].mxu0 %v965
        %v1004 = vpop.f32.mrb[0].mxu0
        %v1005 = vadd.f32 %v916, %v1004
        %v1006 = vpop.f32.mrb[0].mxu0
        %v1007 = vpop.f32.mrb[0].mxu0
        %v1008 = vpop.f32.mrb[0].mxu0
        %1009 = vdwg.mxu0
        %v1011 = vsel %vm917, %v888, 0
        %v1014 = vsel %vm917, %v900, 0
        %1016 = vmatprep.subr.bf16.mxu0 0
        %1017 = vmatpush1.bf16.xpose.msra.mxu0 %v1014
        %1018 = vmatprep.subr.bf16.mxu0 0
        %1019 = vmatpush1.bf16.xpose.msra.mxu0 0
        %1020 = vmatprep.subr.bf16.mxu0 0
        %1021 = vmatpush1.bf16.xpose.msra.mxu0 0
        %1022 = vmatprep.subr.bf16.mxu0 0
        %1023 = vmatpush1.bf16.xpose.msra.mxu0 0
        %1024 = vmatprep.subr.bf16.mxu0 0
        %1025 = vmatpush1.bf16.xpose.msra.mxu0 0
        %1026 = vmatprep.subr.bf16.mxu0 0
        %1027 = vmatpush1.bf16.xpose.msra.mxu0 0
        %1028 = vmatprep.subr.bf16.mxu0 0
        %1029 = vmatpush1.bf16.xpose.msra.mxu0 0
        %1030 = vmatprep.subr.bf16.mxu0 0
        %1031 = vmatpush1.bf16.xpose.msra.mxu0 0
        %1032 = vmatprep.subr.bf16.mxu0 0
        %1033 = vmatpush1.bf16.xpose.msra.mxu0 0
        %1034 = vmatprep.subr.bf16.mxu0 0
        %1035 = vmatpush1.bf16.xpose.msra.mxu0 0
        %1036 = vmatprep.subr.bf16.mxu0 0
        %1037 = vmatpush1.bf16.xpose.msra.mxu0 0
        %1038 = vmatprep.subr.bf16.mxu0 0
        %1039 = vmatpush1.bf16.xpose.msra.mxu0 0
        %1040 = vmatprep.subr.bf16.mxu0 0
        %1041 = vmatpush1.bf16.xpose.msra.mxu0 0
        %1042 = vmatprep.subr.bf16.mxu0 0
        %1043 = vmatpush1.bf16.xpose.msra.mxu0 0
        %1044 = vmatprep.subr.bf16.mxu0 0
        %1045 = vmatpush1.bf16.xpose.msra.mxu0 0
        %1046 = vmatprep.subr.bf16.mxu0 0
        %1047 = vmatpush1.bf16.xpose.msra.mxu0 0
        %1048 = vmatprep.mubr.bf16.mxu0 0
        %1049 = vmatmul.mubr.bf16.gmra.mrb[0].mxu0 %v1011
        %v1050 = vpop.f32.mrb[0].mxu0
        %v1051 = vadd.f32 %v916, %v1050
        %v1052 = vpop.f32.mrb[0].mxu0
        %v1053 = vpop.f32.mrb[0].mxu0
        %v1054 = vpop.f32.mrb[0].mxu0
        %1055 = vdwg.mxu0
        %v1057 = vsel %vm917, %v891, 0
        %v1060 = vsel %vm917, %v903, 0
        %1062 = vmatprep.subr.bf16.mxu0 0
        %1063 = vmatpush1.bf16.xpose.msra.mxu0 %v1060
        %1064 = vmatprep.subr.bf16.mxu0 0
        %1065 = vmatpush1.bf16.xpose.msra.mxu0 0
        %1066 = vmatprep.subr.bf16.mxu0 0
        %1067 = vmatpush1.bf16.xpose.msra.mxu0 0
        %1068 = vmatprep.subr.bf16.mxu0 0
        %1069 = vmatpush1.bf16.xpose.msra.mxu0 0
        %1070 = vmatprep.subr.bf16.mxu0 0
        %1071 = vmatpush1.bf16.xpose.msra.mxu0 0
        %1072 = vmatprep.subr.bf16.mxu0 0
        %1073 = vmatpush1.bf16.xpose.msra.mxu0 0
        %1074 = vmatprep.subr.bf16.mxu0 0
        %1075 = vmatpush1.bf16.xpose.msra.mxu0 0
        %1076 = vmatprep.subr.bf16.mxu0 0
        %1077 = vmatpush1.bf16.xpose.msra.mxu0 0
        %1078 = vmatprep.subr.bf16.mxu0 0
        %1079 = vmatpush1.bf16.xpose.msra.mxu0 0
        %1080 = vmatprep.subr.bf16.mxu0 0
        %1081 = vmatpush1.bf16.xpose.msra.mxu0 0
        %1082 = vmatprep.subr.bf16.mxu0 0
        %1083 = vmatpush1.bf16.xpose.msra.mxu0 0
        %1084 = vmatprep.subr.bf16.mxu0 0
        %1085 = vmatpush1.bf16.xpose.msra.mxu0 0
        %1086 = vmatprep.subr.bf16.mxu0 0
        %1087 = vmatpush1.bf16.xpose.msra.mxu0 0
        %1088 = vmatprep.subr.bf16.mxu0 0
        %1089 = vmatpush1.bf16.xpose.msra.mxu0 0
        %1090 = vmatprep.subr.bf16.mxu0 0
        %1091 = vmatpush1.bf16.xpose.msra.mxu0 0
        %1092 = vmatprep.subr.bf16.mxu0 0
        %1093 = vmatpush1.bf16.xpose.msra.mxu0 0
        %1094 = vmatprep.mubr.bf16.mxu0 0
        %1095 = vmatmul.mubr.bf16.gmra.mrb[0].mxu0 %v1057
        %v1096 = vpop.f32.mrb[0].mxu0
        %v1097 = vadd.f32 %v916, %v1096
        %v1098 = vpop.f32.mrb[0].mxu0
        %v1099 = vpop.f32.mrb[0].mxu0
        %v1100 = vpop.f32.mrb[0].mxu0
        %1101 = vdwg.mxu0
        %v1102 = vsel %vm917, %v959, -inf
        %1103 = vmax.xlane.f32.xlu0 %v1102
        %v1104 = vpop.xlane.xlu0 %1103
        %v1105 = vsel %vm917, %v1005, -inf
        %1106 = vmax.xlane.f32.xlu0 %v1105
        %v1107 = vpop.xlane.xlu0 %1106
        %v1108 = vsel %vm917, %v1051, -inf
        %1109 = vmax.xlane.f32.xlu0 %v1108
        %v1110 = vpop.xlane.xlu0 %1109
        %v1111 = vsel %vm917, %v1097, -inf
        %1112 = vmax.xlane.f32.xlu0 %v1111
        %v1113 = vpop.xlane.xlu0 %1112
        %v1114 = vsub.f32 %v959, %v1104
        %v1115 = vsub.f32 %v1005, %v1107
        %v1116 = vsub.f32 %v1051, %v1110
        %v1117 = vsub.f32 %v1097, %v1113
        %v1118 = vmul.f32 %v1114, 1.442695
        %v1119 = vpow.pop %v1118
        %v1120 = vmul.f32 %v1115, 1.442695
        %v1121 = vpow.pop %v1120
        %v1122 = vmul.f32 %v1116, 1.442695
        %v1123 = vpow.pop %v1122
        %v1124 = vmul.f32 %v1117, 1.442695
        %v1125 = vpow.pop %v1124
        %v1126 = vsel %vm917, %v1119, 0.0
        %1127 = vadd.xlane.f32.xlu0 %v1126
        %v1128 = vpop.xlane.xlu0 %1127
        %v1129 = vsel %vm917, %v1121, 0.0
        %1130 = vadd.xlane.f32.xlu0 %v1129
        %v1131 = vpop.xlane.xlu0 %1130
        %v1132 = vsel %vm917, %v1123, 0.0
        %1133 = vadd.xlane.f32.xlu0 %v1132
        %v1134 = vpop.xlane.xlu0 %1133
        %v1135 = vsel %vm917, %v1125, 0.0
        %1136 = vadd.xlane.f32.xlu0 %v1135
        %v1137 = vpop.xlane.xlu0 %1136
        %v1138 = vrcp.pop %v1128
        %v1139 = vrcp.pop %v1131
        %v1140 = vrcp.pop %v1134
        %v1141 = vrcp.pop %v1137
        %v1142 = vmul.f32 %v1119, %v1138
        %v1143 = vmul.f32 %v1121, %v1139
        %v1144 = vmul.f32 %v1123, %v1140
        %v1145 = vmul.f32 %v1125, %v1141
        %v1146 = vpack.c.bf16 %v1142, %v1142
        %v1147 = vpack.c.bf16 %v1143, %v1143
        %v1148 = vpack.c.bf16 %v1144, %v1144
        %v1149 = vpack.c.bf16 %v1145, %v1145
        %v1151 = vsel %vm917, %v1146, 0
        %vm1153 = vcmask 1043456
        %v1155 = vsel %vm1153, %v906, 0
        %1157 = vmatprep.subr.bf16.mxu0 0
        %1158 = vmatpush1.bf16.msra.mxu0 %v1155
        %1159 = vmatprep.subr.bf16.mxu0 0
        %1160 = vmatpush1.bf16.msra.mxu0 0
        %1161 = vmatprep.subr.bf16.mxu0 0
        %1162 = vmatpush1.bf16.msra.mxu0 0
        %1163 = vmatprep.subr.bf16.mxu0 0
        %1164 = vmatpush1.bf16.msra.mxu0 0
        %1165 = vmatprep.subr.bf16.mxu0 0
        %1166 = vmatpush1.bf16.msra.mxu0 0
        %1167 = vmatprep.subr.bf16.mxu0 0
        %1168 = vmatpush1.bf16.msra.mxu0 0
        %1169 = vmatprep.subr.bf16.mxu0 0
        %1170 = vmatpush1.bf16.msra.mxu0 0
        %1171 = vmatprep.subr.bf16.mxu0 0
        %1172 = vmatpush1.bf16.msra.mxu0 0
        %1173 = vmatprep.subr.bf16.mxu0 0
        %1174 = vmatpush1.bf16.msra.mxu0 0
        %1175 = vmatprep.subr.bf16.mxu0 0
        %1176 = vmatpush1.bf16.msra.mxu0 0
        %1177 = vmatprep.subr.bf16.mxu0 0
        %1178 = vmatpush1.bf16.msra.mxu0 0
        %1179 = vmatprep.subr.bf16.mxu0 0
        %1180 = vmatpush1.bf16.msra.mxu0 0
        %1181 = vmatprep.subr.bf16.mxu0 0
        %1182 = vmatpush1.bf16.msra.mxu0 0
        %1183 = vmatprep.subr.bf16.mxu0 0
        %1184 = vmatpush1.bf16.msra.mxu0 0
        %1185 = vmatprep.subr.bf16.mxu0 0
        %1186 = vmatpush1.bf16.msra.mxu0 0
        %1187 = vmatprep.subr.bf16.mxu0 0
        %1188 = vmatpush1.bf16.msra.mxu0 0
        %1189 = vmatprep.mubr.bf16.mxu0 0
        %1190 = vmatmul.mubr.bf16.gmra.mrb[0].mxu0 %v1151
        %v1191 = vpop.f32.mrb[0].mxu0
        %v1192 = vadd.f32 0.0, %v1191
        %v1193 = vpop.f32.mrb[0].mxu0
        %v1194 = vpop.f32.mrb[0].mxu0
        %v1195 = vpop.f32.mrb[0].mxu0
        %1196 = vdwg.mxu0
        %v1198 = vsel %vm917, %v1147, 0
        %v1201 = vsel %vm1153, %v909, 0
        %1203 = vmatprep.subr.bf16.mxu0 0
        %1204 = vmatpush1.bf16.msra.mxu0 %v1201
        %1205 = vmatprep.subr.bf16.mxu0 0
        %1206 = vmatpush1.bf16.msra.mxu0 0
        %1207 = vmatprep.subr.bf16.mxu0 0
        %1208 = vmatpush1.bf16.msra.mxu0 0
        %1209 = vmatprep.subr.bf16.mxu0 0
        %1210 = vmatpush1.bf16.msra.mxu0 0
        %1211 = vmatprep.subr.bf16.mxu0 0
        %1212 = vmatpush1.bf16.msra.mxu0 0
        %1213 = vmatprep.subr.bf16.mxu0 0
        %1214 = vmatpush1.bf16.msra.mxu0 0
        %1215 = vmatprep.subr.bf16.mxu0 0
        %1216 = vmatpush1.bf16.msra.mxu0 0
        %1217 = vmatprep.subr.bf16.mxu0 0
        %1218 = vmatpush1.bf16.msra.mxu0 0
        %1219 = vmatprep.subr.bf16.mxu0 0
        %1220 = vmatpush1.bf16.msra.mxu0 0
        %1221 = vmatprep.subr.bf16.mxu0 0
        %1222 = vmatpush1.bf16.msra.mxu0 0
        %1223 = vmatprep.subr.bf16.mxu0 0
        %1224 = vmatpush1.bf16.msra.mxu0 0
        %1225 = vmatprep.subr.bf16.mxu0 0
        %1226 = vmatpush1.bf16.msra.mxu0 0
        %1227 = vmatprep.subr.bf16.mxu0 0
        %1228 = vmatpush1.bf16.msra.mxu0 0
        %1229 = vmatprep.subr.bf16.mxu0 0
        %1230 = vmatpush1.bf16.msra.mxu0 0
        %1231 = vmatprep.subr.bf16.mxu0 0
        %1232 = vmatpush1.bf16.msra.mxu0 0
        %1233 = vmatprep.subr.bf16.mxu0 0
        %1234 = vmatpush1.bf16.msra.mxu0 0
        %1235 = vmatprep.mubr.bf16.mxu0 0
        %1236 = vmatmul.mubr.bf16.gmra.mrb[0].mxu0 %v1198
        %v1237 = vpop.f32.mrb[0].mxu0
        %v1238 = vadd.f32 0.0, %v1237
        %v1239 = vpop.f32.mrb[0].mxu0
        %v1240 = vpop.f32.mrb[0].mxu0
        %v1241 = vpop.f32.mrb[0].mxu0
        %1242 = vdwg.mxu0
        %v1244 = vsel %vm917, %v1148, 0
        %v1247 = vsel %vm1153, %v912, 0
        %1249 = vmatprep.subr.bf16.mxu0 0
        %1250 = vmatpush1.bf16.msra.mxu0 %v1247
        %1251 = vmatprep.subr.bf16.mxu0 0
        %1252 = vmatpush1.bf16.msra.mxu0 0
        %1253 = vmatprep.subr.bf16.mxu0 0
        %1254 = vmatpush1.bf16.msra.mxu0 0
        %1255 = vmatprep.subr.bf16.mxu0 0
        %1256 = vmatpush1.bf16.msra.mxu0 0
        %1257 = vmatprep.subr.bf16.mxu0 0
        %1258 = vmatpush1.bf16.msra.mxu0 0
        %1259 = vmatprep.subr.bf16.mxu0 0
        %1260 = vmatpush1.bf16.msra.mxu0 0
        %1261 = vmatprep.subr.bf16.mxu0 0
        %1262 = vmatpush1.bf16.msra.mxu0 0
        %1263 = vmatprep.subr.bf16.mxu0 0
        %1264 = vmatpush1.bf16.msra.mxu0 0
        %1265 = vmatprep.subr.bf16.mxu0 0
        %1266 = vmatpush1.bf16.msra.mxu0 0
        %1267 = vmatprep.subr.bf16.mxu0 0
        %1268 = vmatpush1.bf16.msra.mxu0 0
        %1269 = vmatprep.subr.bf16.mxu0 0
        %1270 = vmatpush1.bf16.msra.mxu0 0
        %1271 = vmatprep.subr.bf16.mxu0 0
        %1272 = vmatpush1.bf16.msra.mxu0 0
        %1273 = vmatprep.subr.bf16.mxu0 0
        %1274 = vmatpush1.bf16.msra.mxu0 0
        %1275 = vmatprep.subr.bf16.mxu0 0
        %1276 = vmatpush1.bf16.msra.mxu0 0
        %1277 = vmatprep.subr.bf16.mxu0 0
        %1278 = vmatpush1.bf16.msra.mxu0 0
        %1279 = vmatprep.subr.bf16.mxu0 0
        %1280 = vmatpush1.bf16.msra.mxu0 0
        %1281 = vmatprep.mubr.bf16.mxu0 0
        %1282 = vmatmul.mubr.bf16.gmra.mrb[0].mxu0 %v1244
        %v1283 = vpop.f32.mrb[0].mxu0
        %v1284 = vadd.f32 0.0, %v1283
        %v1285 = vpop.f32.mrb[0].mxu0
        %v1286 = vpop.f32.mrb[0].mxu0
        %v1287 = vpop.f32.mrb[0].mxu0
        %1288 = vdwg.mxu0
        %v1290 = vsel %vm917, %v1149, 0
        %v1293 = vsel %vm1153, %v915, 0
        %1295 = vmatprep.subr.bf16.mxu0 0
        %1296 = vmatpush1.bf16.msra.mxu0 %v1293
        %1297 = vmatprep.subr.bf16.mxu0 0
        %1298 = vmatpush1.bf16.msra.mxu0 0
        %1299 = vmatprep.subr.bf16.mxu0 0
        %1300 = vmatpush1.bf16.msra.mxu0 0
        %1301 = vmatprep.subr.bf16.mxu0 0
        %1302 = vmatpush1.bf16.msra.mxu0 0
        %1303 = vmatprep.subr.bf16.mxu0 0
        %1304 = vmatpush1.bf16.msra.mxu0 0
        %1305 = vmatprep.subr.bf16.mxu0 0
        %1306 = vmatpush1.bf16.msra.mxu0 0
        %1307 = vmatprep.subr.bf16.mxu0 0
        %1308 = vmatpush1.bf16.msra.mxu0 0
        %1309 = vmatprep.subr.bf16.mxu0 0
        %1310 = vmatpush1.bf16.msra.mxu0 0
        %1311 = vmatprep.subr.bf16.mxu0 0
        %1312 = vmatpush1.bf16.msra.mxu0 0
        %1313 = vmatprep.subr.bf16.mxu0 0
        %1314 = vmatpush1.bf16.msra.mxu0 0
        %1315 = vmatprep.subr.bf16.mxu0 0
        %1316 = vmatpush1.bf16.msra.mxu0 0
        %1317 = vmatprep.subr.bf16.mxu0 0
        %1318 = vmatpush1.bf16.msra.mxu0 0
        %1319 = vmatprep.subr.bf16.mxu0 0
        %1320 = vmatpush1.bf16.msra.mxu0 0
        %1321 = vmatprep.subr.bf16.mxu0 0
        %1322 = vmatpush1.bf16.msra.mxu0 0
        %1323 = vmatprep.subr.bf16.mxu0 0
        %1324 = vmatpush1.bf16.msra.mxu0 0
        %1325 = vmatprep.subr.bf16.mxu0 0
        %1326 = vmatpush1.bf16.msra.mxu0 0
        %1327 = vmatprep.mubr.bf16.mxu0 0
        %1328 = vmatmul.mubr.bf16.gmra.mrb[0].mxu0 %v1290
        %v1329 = vpop.f32.mrb[0].mxu0
        %v1330 = vadd.f32 0.0, %v1329
        %v1331 = vpop.f32.mrb[0].mxu0
        %v1332 = vpop.f32.mrb[0].mxu0
        %v1333 = vpop.f32.mrb[0].mxu0
        %1334 = vdwg.mxu0
        %v1335 = vcombine.low %v1192, %v1284
        %v1336 = vcombine.high %v1192, %v1284
        %v1338 = vunpack.c.l.s4 1983009808
        %v1339 = vunpack.c.0.s8 %v1338
        %v1340 = vlaneseq
        %v1341 = vshrl.u32 %v1340, 7
        %v1342 = vsub.s32 %v1339, %v1341
        %v1343 = vrot.slane %v1335, %v1342
        %v1345 = vunpack.c.l.s4 1983009808
        %v1346 = vunpack.c.0.s8 %v1345
        %v1347 = vlaneseq
        %v1348 = vshrl.u32 %v1347, 7
        %v1349 = vsub.s32 %v1346, %v1348
        %v1350 = vrot.slane %v1336, %v1349
        %v1351 = vcombine.low %v1238, %v1330
        %v1352 = vcombine.high %v1238, %v1330
        %v1354 = vunpack.c.l.s4 1983009808
        %v1355 = vunpack.c.0.s8 %v1354
        %v1356 = vlaneseq
        %v1357 = vshrl.u32 %v1356, 7
        %v1358 = vsub.s32 %v1355, %v1357
        %v1359 = vrot.slane %v1351, %v1358
        %v1361 = vunpack.c.l.s4 1983009808
        %v1362 = vunpack.c.0.s8 %v1361
        %v1363 = vlaneseq
        %v1364 = vshrl.u32 %v1363, 7
        %v1365 = vsub.s32 %v1362, %v1364
        %v1366 = vrot.slane %v1352, %v1365
        %v1367 = vcombine.low %v1343, %v1359
        %v1368 = vcombine.high %v1343, %v1359
        %v1370 = vunpack.c.l.s4 1934713408
        %v1371 = vunpack.c.0.s8 %v1370
        %v1372 = vlaneseq
        %v1373 = vshrl.u32 %v1372, 7
        %v1374 = vsub.s32 %v1371, %v1373
        %v1375 = vrot.slane %v1367, %v1374
        %v1377 = vunpack.c.l.s4 1934713408
        %v1378 = vunpack.c.0.s8 %v1377
        %v1379 = vlaneseq
        %v1380 = vshrl.u32 %v1379, 7
        %v1381 = vsub.s32 %v1378, %v1380
        %v1382 = vrot.slane %v1368, %v1381
        %v1383 = vcombine.low %v1350, %v1366
        %v1384 = vcombine.high %v1350, %v1366
        %v1386 = vunpack.c.l.s4 1934713408
        %v1387 = vunpack.c.0.s8 %v1386
        %v1388 = vlaneseq
        %v1389 = vshrl.u32 %v1388, 7
        %v1390 = vsub.s32 %v1387, %v1389
        %v1391 = vrot.slane %v1383, %v1390
        %v1393 = vunpack.c.l.s4 1934713408
        %v1394 = vunpack.c.0.s8 %v1393
        %v1395 = vlaneseq
        %v1396 = vshrl.u32 %v1395, 7
        %v1397 = vsub.s32 %v1394, %v1396
        %v1398 = vrot.slane %v1384, %v1397
        %v1399 = vcombine.high %v1375, 0.0
        %v1400 = vcombine.high %v1382, 0.0
        %v1401 = vcombine.high %v1391, 0.0
        %v1402 = vcombine.high %v1398, 0.0
        %v1403 = vcombine.low %v1375, %v1382
        %v1405 = vunpack.c.l.s4 1983009808
        %v1406 = vunpack.c.0.s8 %v1405
        %v1407 = vlaneseq
        %v1408 = vshrl.u32 %v1407, 7
        %v1409 = vsub.s32 %v1406, %v1408
        %v1410 = vrot.slane %v1403, %v1409
        %v1411 = vcombine.low %v1399, %v1400
        %v1413 = vunpack.c.l.s4 1983009808
        %v1414 = vunpack.c.0.s8 %v1413
        %v1415 = vlaneseq
        %v1416 = vshrl.u32 %v1415, 7
        %v1417 = vsub.s32 %v1414, %v1416
        %v1418 = vrot.slane %v1411, %v1417
        %v1419 = vcombine.low %v1391, %v1398
        %v1421 = vunpack.c.l.s4 1983009808
        %v1422 = vunpack.c.0.s8 %v1421
        %v1423 = vlaneseq
        %v1424 = vshrl.u32 %v1423, 7
        %v1425 = vsub.s32 %v1422, %v1424
        %v1426 = vrot.slane %v1419, %v1425
        %v1427 = vcombine.low %v1401, %v1402
        %v1429 = vunpack.c.l.s4 1983009808
        %v1430 = vunpack.c.0.s8 %v1429
        %v1431 = vlaneseq
        %v1432 = vshrl.u32 %v1431, 7
        %v1433 = vsub.s32 %v1430, %v1432
        %v1434 = vrot.slane %v1427, %v1433
        %v1435 = vcombine.low %v1410, %v1418
        %v1436 = vcombine.high %v1410, %v1418
        %v1438 = vunpack.c.l.s4 1934713408
        %v1439 = vunpack.c.0.s8 %v1438
        %v1440 = vlaneseq
        %v1441 = vshrl.u32 %v1440, 7
        %v1442 = vsub.s32 %v1439, %v1441
        %v1443 = vrot.slane %v1435, %v1442
        %v1445 = vunpack.c.l.s4 1934713408
        %v1446 = vunpack.c.0.s8 %v1445
        %v1447 = vlaneseq
        %v1448 = vshrl.u32 %v1447, 7
        %v1449 = vsub.s32 %v1446, %v1448
        %v1450 = vrot.slane %v1436, %v1449
        %v1451 = vcombine.low %v1426, %v1434
        %v1452 = vcombine.high %v1426, %v1434
        %v1454 = vunpack.c.l.s4 1934713408
        %v1455 = vunpack.c.0.s8 %v1454
        %v1456 = vlaneseq
        %v1457 = vshrl.u32 %v1456, 7
        %v1458 = vsub.s32 %v1455, %v1457
        %v1459 = vrot.slane %v1451, %v1458
        %v1461 = vunpack.c.l.s4 1934713408
        %v1462 = vunpack.c.0.s8 %v1461
        %v1463 = vlaneseq
        %v1464 = vshrl.u32 %v1463, 7
        %v1465 = vsub.s32 %v1462, %v1464
        %v1466 = vrot.slane %v1452, %v1465
        %v1467 = vcombine.low %v1443, %v1459
        %v1468 = vcombine.high %v1443, %v1459
        %v1469 = vcombine.low %v1450, %v1466
        %v1470 = vcombine.high %v1450, %v1466
        %1472 = vrot.lane.b32.xlu0 %v1468, 8
        %v1473 = vpop.permute.xlu0 %1472
        %1476 = vrot.lane.b32.xlu0 %v1469, 16
        %v1477 = vpop.permute.xlu0 %1476
        %1480 = vrot.lane.b32.xlu0 %v1470, 24
        %v1481 = vpop.permute.xlu0 %1480
        %v1483 = vsel %vm917, %v1467, %v1473
        %vm1484 = vcmask 130048
        %v1485 = vsel %vm1484, %v1483, %v1477
        %vm1486 = vcmask 195584
        %v1487 = vsel %vm1486, %v1485, %v1481
        %v1488 = vpack.c.bf16 %v1487, %v1487
        %v1489 = vld [vmem:[%s6] sm:$0xf]
        %v1490 = vld [vmem:[%s6 + $0x4] sm:$0xf]
        %v1491 = vld [vmem:[%s6 + $0x8] sm:$0xf]
        %v1492 = vld [vmem:[%s6 + $0xc] sm:$0xf]
        %v1493 = vld [vmem:[%s7] sm:$0x1]
        %v1495 = vlaneseq
        %v1496 = vshrl.u32 %v1495, 7
        %v1497 = vsub.s32 0, %v1496
        %v1498 = vrot.slane %v1493, %v1497
        %v1504 = vunpack.c.l.b16 %v1489
        %v1505 = vunpack.c.l.b16 %v1490
        %v1506 = vunpack.c.l.b16 %v1491
        %v1507 = vunpack.c.l.b16 %v1492
        %v1508 = vpack.c.b16 %v1505, %v1504
        %v1509 = vpack.c.b16 %v1507, %v1506
        %v1513 = vsel %vm467, %v1488, 0
        %1515 = vmatprep.subr.bf16.mxu0 0
        %1516 = vmatpush1.bf16.msra.mxu0 %v1508
        %1517 = vmatprep.subr.bf16.mxu0 0
        %1518 = vmatpush1.bf16.msra.mxu0 %v1509
        %1519 = vmatprep.subr.bf16.mxu0 0
        %1520 = vmatpush1.bf16.msra.mxu0 0
        %1521 = vmatprep.subr.bf16.mxu0 0
        %1522 = vmatpush1.bf16.msra.mxu0 0
        %1523 = vmatprep.subr.bf16.mxu0 0
        %1524 = vmatpush1.bf16.msra.mxu0 0
        %1525 = vmatprep.subr.bf16.mxu0 0
        %1526 = vmatpush1.bf16.msra.mxu0 0
        %1527 = vmatprep.subr.bf16.mxu0 0
        %1528 = vmatpush1.bf16.msra.mxu0 0
        %1529 = vmatprep.subr.bf16.mxu0 0
        %1530 = vmatpush1.bf16.msra.mxu0 0
        %1531 = vmatprep.subr.bf16.mxu0 0
        %1532 = vmatpush1.bf16.msra.mxu0 0
        %1533 = vmatprep.subr.bf16.mxu0 0
        %1534 = vmatpush1.bf16.msra.mxu0 0
        %1535 = vmatprep.subr.bf16.mxu0 0
        %1536 = vmatpush1.bf16.msra.mxu0 0
        %1537 = vmatprep.subr.bf16.mxu0 0
        %1538 = vmatpush1.bf16.msra.mxu0 0
        %1539 = vmatprep.subr.bf16.mxu0 0
        %1540 = vmatpush1.bf16.msra.mxu0 0
        %1541 = vmatprep.subr.bf16.mxu0 0
        %1542 = vmatpush1.bf16.msra.mxu0 0
        %1543 = vmatprep.subr.bf16.mxu0 0
        %1544 = vmatpush1.bf16.msra.mxu0 0
        %1545 = vmatprep.subr.bf16.mxu0 0
        %1546 = vmatpush1.bf16.msra.mxu0 0
        %1547 = vmatprep.mubr.bf16.mxu0 0
        %1548 = vmatmul.mubr.bf16.gmra.mrb[0].mxu0 %v1513
        %v1549 = vpop.f32.mrb[0].mxu0
        %v1550 = vadd.f32 %v1498, %v1549
        %v1551 = vpop.f32.mrb[0].mxu0
        %v1552 = vpop.f32.mrb[0].mxu0
        %v1553 = vpop.f32.mrb[0].mxu0
        %1554 = vdwg.mxu0
        %v1555 = vadd.f32 %v1550, %v464
        %v1556 = vld [vmem:[%s8] sm:$0x1]
        %v1557 = vld [vmem:[%s9] sm:$0x1]
        %v1558 = vsel %vm467, %v1555, 0.0
        %1559 = vadd.xlane.f32.xlu0 %v1558
        %v1560 = vpop.xlane.xlu0 %1559
        %v1561 = vmul.f32 %v1560, %v471
        %v1562 = vsub.f32 %v1555, %v1561
        %v1563 = vmul.f32 %v1562, %v1562
        %v1564 = vsel %vm467, %v1563, 0.0
        %1565 = vadd.xlane.f32.xlu0 %v1564
        %v1566 = vpop.xlane.xlu0 %1565
        %v1567 = vmul.f32 %v1566, %v471
        %v1568 = vadd.f32 %v1567, 1e-05
        %v1569 = vrsqrt.pop %v1568
        %v1570 = vmul.f32 %v1562, %v1569
        %v1572 = vlaneseq
        %v1573 = vshrl.u32 %v1572, 7
        %v1574 = vsub.s32 0, %v1573
        %v1575 = vrot.slane %v1556, %v1574
        %v1577 = vmul.f32 %v1570, %v1575
        %v1579 = vlaneseq
        %v1580 = vshrl.u32 %v1579, 7
        %v1581 = vsub.s32 0, %v1580
        %v1582 = vrot.slane %v1557, %v1581
        %v1584 = vadd.f32 %v1577, %v1582
        %v1585 = vpack.c.bf16 %v1584, %v1584
        %v1586 = vld [vmem:[%s10] sm:$0xf]
        %v1587 = vld [vmem:[%s10 + $0x4] sm:$0xf]
        %v1588 = vld [vmem:[%s10 + $0x8] sm:$0xf]
        %v1589 = vld [vmem:[%s10 + $0xc] sm:$0xf]
        %v1590 = vld [vmem:[%s11] sm:$0x1]
        %v1592 = vlaneseq
        %v1593 = vshrl.u32 %v1592, 7
        %v1594 = vsub.s32 0, %v1593
        %v1595 = vrot.slane %v1590, %v1594
        %v1601 = vunpack.c.l.b16 %v1586
        %v1602 = vunpack.c.l.b16 %v1587
        %v1603 = vunpack.c.l.b16 %v1588
        %v1604 = vunpack.c.l.b16 %v1589
        %v1605 = vpack.c.b16 %v1602, %v1601
        %v1606 = vpack.c.b16 %v1604, %v1603
        %v1610 = vsel %vm467, %v1585, 0
        %1612 = vmatprep.subr.bf16.mxu0 0
        %1613 = vmatpush1.bf16.msra.mxu0 %v1605
        %1614 = vmatprep.subr.bf16.mxu0 0
        %1615 = vmatpush1.bf16.msra.mxu0 %v1606
        %1616 = vmatprep.subr.bf16.mxu0 0
        %1617 = vmatpush1.bf16.msra.mxu0 0
        %1618 = vmatprep.subr.bf16.mxu0 0
        %1619 = vmatpush1.bf16.msra.mxu0 0
        %1620 = vmatprep.subr.bf16.mxu0 0
        %1621 = vmatpush1.bf16.msra.mxu0 0
        %1622 = vmatprep.subr.bf16.mxu0 0
        %1623 = vmatpush1.bf16.msra.mxu0 0
        %1624 = vmatprep.subr.bf16.mxu0 0
        %1625 = vmatpush1.bf16.msra.mxu0 0
        %1626 = vmatprep.subr.bf16.mxu0 0
        %1627 = vmatpush1.bf16.msra.mxu0 0
        %1628 = vmatprep.subr.bf16.mxu0 0
        %1629 = vmatpush1.bf16.msra.mxu0 0
        %1630 = vmatprep.subr.bf16.mxu0 0
        %1631 = vmatpush1.bf16.msra.mxu0 0
        %1632 = vmatprep.subr.bf16.mxu0 0
        %1633 = vmatpush1.bf16.msra.mxu0 0
        %1634 = vmatprep.subr.bf16.mxu0 0
        %1635 = vmatpush1.bf16.msra.mxu0 0
        %1636 = vmatprep.subr.bf16.mxu0 0
        %1637 = vmatpush1.bf16.msra.mxu0 0
        %1638 = vmatprep.subr.bf16.mxu0 0
        %1639 = vmatpush1.bf16.msra.mxu0 0
        %1640 = vmatprep.subr.bf16.mxu0 0
        %1641 = vmatpush1.bf16.msra.mxu0 0
        %1642 = vmatprep.subr.bf16.mxu0 0
        %1643 = vmatpush1.bf16.msra.mxu0 0
        %1644 = vmatprep.mubr.bf16.mxu0 0
        %1645 = vmatmul.mubr.bf16.gmra.mrb[0].mxu0 %v1610
        %v1646 = vpop.f32.mrb[0].mxu0
        %v1647 = vadd.f32 %v1595, %v1646
        %v1648 = vpop.f32.mrb[0].mxu0
        %v1649 = vpop.f32.mrb[0].mxu0
        %v1650 = vpop.f32.mrb[0].mxu0
        %1651 = vdwg.mxu0
        %v1652 = vmul.f32 %v1647, -1.702
        %v1653 = vmul.f32 %v1652, 1.442695
        %v1654 = vpow.pop %v1653
        %v1655 = vadd.f32 %v1654, 1.0
        %v1656 = vrcp.pop %v1655
        %v1657 = vmul.f32 %v1647, %v1656
        %v1658 = vpack.c.bf16 %v1657, %v1657
        %v1659 = vld [vmem:[%s12] sm:$0xf]
        %v1660 = vld [vmem:[%s12 + $0x4] sm:$0xf]
        %v1661 = vld [vmem:[%s12 + $0x8] sm:$0xf]
        %v1662 = vld [vmem:[%s12 + $0xc] sm:$0xf]
        %v1663 = vld [vmem:[%s12 + $0x10] sm:$0xf]
        %v1664 = vld [vmem:[%s12 + $0x14] sm:$0xf]
        %v1665 = vld [vmem:[%s12 + $0x18] sm:$0xf]
        %v1666 = vld [vmem:[%s12 + $0x1c] sm:$0xf]
        %v1667 = vld [vmem:[%s12 + $0x20] sm:$0xf]
        %v1668 = vld [vmem:[%s12 + $0x24] sm:$0xf]
        %v1669 = vld [vmem:[%s12 + $0x28] sm:$0xf]
        %v1670 = vld [vmem:[%s12 + $0x2c] sm:$0xf]
        %v1671 = vld [vmem:[%s12 + $0x30] sm:$0xf]
        %v1672 = vld [vmem:[%s12 + $0x34] sm:$0xf]
        %v1673 = vld [vmem:[%s12 + $0x38] sm:$0xf]
        %v1674 = vld [vmem:[%s12 + $0x3c] sm:$0xf]
        %v1675 = vld [vmem:[%s13] sm:$0x1]
        %v1677 = vlaneseq
        %v1678 = vshrl.u32 %v1677, 7
        %v1679 = vsub.s32 0, %v1678
        %v1680 = vrot.slane %v1675, %v1679
        %v1698 = vunpack.c.l.b16 %v1659
        %v1699 = vunpack.c.l.b16 %v1660
        %v1700 = vunpack.c.l.b16 %v1661
        %v1701 = vunpack.c.l.b16 %v1662
        %v1702 = vunpack.c.l.b16 %v1663
        %v1703 = vunpack.c.l.b16 %v1664
        %v1704 = vunpack.c.l.b16 %v1665
        %v1705 = vunpack.c.l.b16 %v1666
        %v1706 = vunpack.c.l.b16 %v1667
        %v1707 = vunpack.c.l.b16 %v1668
        %v1708 = vunpack.c.l.b16 %v1669
        %v1709 = vunpack.c.l.b16 %v1670
        %v1710 = vunpack.c.l.b16 %v1671
        %v1711 = vunpack.c.l.b16 %v1672
        %v1712 = vunpack.c.l.b16 %v1673
        %v1713 = vunpack.c.l.b16 %v1674
        %v1714 = vpack.c.b16 %v1699, %v1698
        %v1715 = vpack.c.b16 %v1701, %v1700
        %v1716 = vpack.c.b16 %v1703, %v1702
        %v1717 = vpack.c.b16 %v1705, %v1704
        %v1718 = vpack.c.b16 %v1707, %v1706
        %v1719 = vpack.c.b16 %v1709, %v1708
        %v1720 = vpack.c.b16 %v1711, %v1710
        %v1721 = vpack.c.b16 %v1713, %v1712
        %1730 = vmatprep.subr.bf16.mxu0 0
        %1731 = vmatpush1.bf16.msra.mxu0 %v1714
        %1732 = vmatprep.subr.bf16.mxu0 0
        %1733 = vmatpush1.bf16.msra.mxu0 %v1715
        %1734 = vmatprep.subr.bf16.mxu0 0
        %1735 = vmatpush1.bf16.msra.mxu0 %v1716
        %1736 = vmatprep.subr.bf16.mxu0 0
        %1737 = vmatpush1.bf16.msra.mxu0 %v1717
        %1738 = vmatprep.subr.bf16.mxu0 0
        %1739 = vmatpush1.bf16.msra.mxu0 %v1718
        %1740 = vmatprep.subr.bf16.mxu0 0
        %1741 = vmatpush1.bf16.msra.mxu0 %v1719
        %1742 = vmatprep.subr.bf16.mxu0 0
        %1743 = vmatpush1.bf16.msra.mxu0 %v1720
        %1744 = vmatprep.subr.bf16.mxu0 0
        %1745 = vmatpush1.bf16.msra.mxu0 %v1721
        %1746 = vmatprep.subr.bf16.mxu0 0
        %1747 = vmatpush1.bf16.msra.mxu0 0
        %1748 = vmatprep.subr.bf16.mxu0 0
        %1749 = vmatpush1.bf16.msra.mxu0 0
        %1750 = vmatprep.subr.bf16.mxu0 0
        %1751 = vmatpush1.bf16.msra.mxu0 0
        %1752 = vmatprep.subr.bf16.mxu0 0
        %1753 = vmatpush1.bf16.msra.mxu0 0
        %1754 = vmatprep.subr.bf16.mxu0 0
        %1755 = vmatpush1.bf16.msra.mxu0 0
        %1756 = vmatprep.subr.bf16.mxu0 0
        %1757 = vmatpush1.bf16.msra.mxu0 0
        %1758 = vmatprep.subr.bf16.mxu0 0
        %1759 = vmatpush1.bf16.msra.mxu0 0
        %1760 = vmatprep.subr.bf16.mxu0 0
        %1761 = vmatpush1.bf16.msra.mxu0 0
        %1762 = vmatprep.mubr.bf16.mxu0 0
        %1763 = vmatmul.mubr.bf16.gmra.mrb[0].mxu0 %v1658
        %v1764 = vpop.f32.mrb[0].mxu0
        %v1765 = vadd.f32 %v1680, %v1764
        %v1766 = vpop.f32.mrb[0].mxu0
        %v1767 = vpop.f32.mrb[0].mxu0
        %v1768 = vpop.f32.mrb[0].mxu0
        %1769 = vdwg.mxu0
        %v1770 = vadd.f32 %v1765, %v1555
        %1771 = vst.msk [vmem:[%s458] sm:$0xff] %vm467, %v1770
        %s1772 = sand.u32 %s335, 1
        %s1773 = scalar_lea.sflag [#allocation3], %s1772
        %s1774 = sand.u32 %s335, 1
        %s1775 = smul.addr %s1774, 8
        %s1776 = scalar_lea.vmem [#allocation2], %s1775
        // Predicated region
        $region77: #{tpu_custom_call.1} parent=75 // pred_check
          %p1777 = pneg %p345
        $region78: #{tpu_custom_call.1} parent=75 // pred_check_branch
          %1779 = sbr.rel (%p1777) target = $region80
        $region79: #{tpu_custom_call.1} parent=75 // pred_region
          %s1781 = ssub.s32 128, 128
          %1782 = vsyncadd %s1773, %s1781
          %s1783 = smul.addr %s28, 128
          %s1784 = scalar_lea.hbm %s14, %s1783
          %s1786 = sshll.u32 %s1776, 4
          %s1787 = int_to_ptr.vmem [resolvable:$true] %s1786
          %1789 = dma.vmem_to_hbm [thread:$0]  %s1787, 128, %s1784, %s1773
        $region80: #{tpu_custom_call.1} parent=75 // pred_fallthru
          _
      $region76: #{tpu_custom_call.1} parent=5 // pred_fallthru
        _
      %p1790 = scmp.le.s32.totalorder 2, %s23
      // Predicated region
      $region81: #{tpu_custom_call.1} parent=5 // pred_check
        %p1791 = pneg %p1790
      $region82: #{tpu_custom_call.1} parent=5 // pred_check_branch
        %1793 = sbr.rel (%p1791) target = $region84
      $region83: #{tpu_custom_call.1} parent=5 // pred_region
        %s1794 = ssub.s32 %s23, 2
        // Predicated region
        $region85: #{tpu_custom_call.1} parent=83 // pred_check
          %p1795 = pneg %p351
        $region86: #{tpu_custom_call.1} parent=83 // pred_check_branch
          %1797 = sbr.rel (%p1795) target = $region88
        $region87: #{tpu_custom_call.1} parent=83 // pred_region
          %s1798 = sand.u32 %s336, 1
          %s1799 = scalar_lea.sflag [#allocation3], %s1798
          %s1800 = sand.u32 %s336, 1
          %s1801 = smul.addr %s1800, 8
          %s1802 = scalar_lea.vmem [#allocation2], %s1801
          %1803 = dma.done %s1799, 128
        $region88: #{tpu_custom_call.1} parent=83 // pred_fallthru
          _
      $region84: #{tpu_custom_call.1} parent=5 // pred_fallthru
        _
    $region6: #{tpu_custom_call.1} parent=1 // loop_footer
      %s27 = sadd.s32 1, %s23
    $region7: #{tpu_custom_call.1} parent=1 // loop_footer_branch
      %22 = sbr.rel target = $region3
    $region8: #{tpu_custom_call.1} parent=1 // loop_exit
      _
    %1804 = vsyncpa [#allocation3], 1
    %s1805 = scalar_lea.sflag [#allocation3], 1
    %1806 = vsyncpa %s1805, 1

</llo_original>
